<compile_context>
chip_gen: v7x
topology: tpu7x:2x2x1
jax: 0.10.0
libtpu: 0.0.40
codegen_flags: <defaults>
</compile_context>

<pallas_src>
import functools

import jax
import jax.numpy as jnp
from jax.experimental import pallas as pl
from jax.experimental.pallas import tpu as pltpu


def _attention_kernel(x_ref, w_ref, b_ref, u_ref, o_ref, *, L, C):
    # x_ref: (TN, L*C)   flattened node features, native dtype (f32 or bf16)
    # w_ref: (L*C, L*M)  block-diagonal weight (diag blocks = liner.weight.T), x dtype
    # b_ref: (1, L*M)    liner.bias tiled L times, x dtype
    # u_ref: (L*M, L)    U.weight scattered: column j holds u in rows j*M:(j+1)*M, f32
    # o_ref: (TN, C)
    x = x_ref[...]                                                   # native dtype

    # h = tanh(liner(x)) -- single lane-dense MXU matmul (K = L*C), f32 accumulation
    h = jnp.tanh(
        jnp.dot(x, w_ref[...], preferred_element_type=jnp.float32)
        + b_ref[...]
    )                                                                # (TN, L*M) f32

    # s = U(h) -- narrow second matmul on the otherwise idle MXU -> (TN, L)
    s = jnp.dot(h, u_ref[...], preferred_element_type=jnp.float32)

    # softmax over len_args (numerically stable, EUP reciprocal)
    m = jnp.max(s, axis=-1, keepdims=True)
    e = jnp.exp(s - m)
    w = e * pl.reciprocal(jnp.sum(e, axis=-1, keepdims=True), approx=True)

    # torch.mul(node_feature, weight).sum(dim=1); weight broadcast over channels.
    # x slices stay native dtype; multiplying by f32 w promotes the accumulator to f32.
    acc = x[:, 0:C] * w[:, 0:1]
    for j in range(1, L):
        acc = acc + x[:, j * C:(j + 1) * C] * w[:, j:j + 1]
    o_ref[...] = acc.astype(o_ref.dtype)


def prepare_params(w1, b1, u, L):
    """Host-side, one-time parameter packing (do NOT rebuild per call).

    w1: (M, C) = liner.weight, b1: (M,) = liner.bias, u: (M,) = U.weight[0]
    Returns:
      w_bd   (L*C, L*M)  block-diagonal weight (zero off-diagonal blocks),
      b_tile (1, L*M)    bias tiled L times,
      u_seg  (L*M, L)    U weight scattered per-arg (column j <- rows j*M:(j+1)*M).
    """
    M, C = w1.shape
    w1_t = jnp.asarray(w1, jnp.float32).T                           # (C, M)
    w_bd = jnp.zeros((L * C, L * M), jnp.float32)
    for j in range(L):
        w_bd = w_bd.at[j * C:(j + 1) * C, j * M:(j + 1) * M].set(w1_t)
    b_tile = jnp.tile(jnp.asarray(b1, jnp.float32)[None, :], (1, L))  # (1, L*M)
    u_vec = jnp.asarray(u, jnp.float32)
    u_seg = jnp.zeros((L * M, L), jnp.float32)
    for j in range(L):
        u_seg = u_seg.at[j * M:(j + 1) * M, j].set(u_vec)
    return w_bd, b_tile, u_seg


def _choose_tile(N, tile_n):
    """Pick node-tile size: multiple of 32, >=4 grid steps when N allows it."""
    tn = max(32, (int(tile_n) // 32) * 32)
    if N >= 4 * 32:
        # keep at least ~4 grid steps so pipelining + v7x megacore sharding engage
        tn = min(tn, max(32, ((N // 4) // 32) * 32))
    # never larger than the (rounded-up) node count
    tn = min(tn, ((N + 31) // 32) * 32)
    return tn


def attention_net_pallas(x, w_bd, b_tile, u_seg, *, tile_n=None):
    """x: [N, L, C]; packed params from prepare_params  ->  [N, C]."""
    N, L, C = x.shape
    LC = L * C
    LM = w_bd.shape[1]
    assert w_bd.shape[0] == LC and u_seg.shape == (LM, L)

    itemsize = jnp.dtype(x.dtype).itemsize
    if tile_n is None:
        # target >= ~1 MiB x blocks: 2048 rows f32, 4096 rows bf16
        tile_n = 4096 if itemsize <= 2 else 2048
    tn = _choose_tile(N, tile_n)
    grid = (pl.cdiv(N, tn),)                       # ragged tail block is masked by Pallas

    x_flat = x.reshape(N, LC)                      # free row-major reshape, no copy

    # keep params in the x dtype so bf16 inputs hit the native-bf16 MXU path;
    # u_seg stays f32 (it multiplies the f32 h)
    w_bd_c = w_bd.astype(x.dtype)
    b_c = b_tile.astype(x.dtype)
    u_c = u_seg.astype(jnp.float32)

    # explicit VMEM budget: double-buffered x + (lane-padded) out + params, 2x headroom
    est = (2 * tn * LC * itemsize                  # x double buffer
           + 2 * tn * max(C, 128) * itemsize       # out double buffer (lane-padded)
           + 2 * (w_bd_c.size * w_bd_c.dtype.itemsize
                  + b_c.size * b_c.dtype.itemsize
                  + u_c.size * u_c.dtype.itemsize)
           + (2 << 20))
    vmem_limit = int(min(max(2 * est, 8 << 20), 32 << 20))   # safe on v7x (64 MiB phys)

    # memory-bound custom call: tell the scheduler how cheap/heavy it is
    param_bytes = (w_bd_c.size * w_bd_c.dtype.itemsize
                   + b_c.size * b_c.dtype.itemsize
                   + u_c.size * u_c.dtype.itemsize)
    cost = pl.CostEstimate(
        flops=int(2 * N * LC * LM + 2 * N * LM * L + 6 * N * LC),
        transcendentals=int(N * (LM + L)),
        bytes_accessed=int(N * (LC + C) * itemsize + param_bytes),
    )

    return pl.pallas_call(
        functools.partial(_attention_kernel, L=L, C=C),
        out_shape=jax.ShapeDtypeStruct((N, C), x.dtype),
        grid=grid,
        in_specs=[
            pl.BlockSpec((tn, LC), lambda i: (i, 0)),
            pl.BlockSpec((LC, LM), lambda i: (0, 0)),   # params: constant index maps,
            pl.BlockSpec((1, LM), lambda i: (0, 0)),    # never re-DMA'd
            pl.BlockSpec((LM, L), lambda i: (0, 0)),
        ],
        out_specs=pl.BlockSpec((tn, C), lambda i: (i, 0)),
        compiler_params=pltpu.CompilerParams(
            dimension_semantics=("parallel",),
            vmem_limit_bytes=vmem_limit,
        ),
        cost_estimate=cost,
    )(x_flat, w_bd_c, b_c, u_c)


def attention_net_ref(x, w1, b1, u):
    """Plain-JAX reference matching the PyTorch forward."""
    h = jnp.tanh(jnp.einsum("nlc,mc->nlm", x, w1) + b1)     # (N, L, M)
    s = jnp.einsum("nlm,m->nl", h, u)[..., None]            # (N, L, 1)
    w = jax.nn.softmax(s, axis=1)                           # softmax over len_args
    return jnp.sum(x * w, axis=1)                           # (N, C)


if __name__ == "__main__":
    # Shapes consistent with the module's forward:
    #   node_feature: [number_nodes, len_args=4, ggnn_out_channels=32]
    #   input_dim = 32 (ggnn_out_channels), middle_dim = 16
    N, L, C, M = 1000, 4, 32, 16      # ragged N exercises the masked tail block

    key = jax.random.PRNGKey(0)
    kx, kw1, kb1, ku = jax.random.split(key, 4)

    x = jax.random.normal(kx, (N, L, C), dtype=jnp.float32)
    # nn.Linear layouts: liner.weight [M, C], liner.bias [M]; U.weight [1, M] (no bias)
    w1 = jax.random.normal(kw1, (M, C), dtype=jnp.float32) * (1.0 / jnp.sqrt(C))
    b1 = jax.random.normal(kb1, (M,), dtype=jnp.float32) * 0.1
    u = jax.random.normal(ku, (M,), dtype=jnp.float32) * (1.0 / jnp.sqrt(M))

    # one-time host-side parameter packing
    w_bd, b_tile, u_seg = prepare_params(w1, b1, u, L)

    # float32 path (auto tile -> multi-step grid with a partial tail block)
    out = attention_net_pallas(x, w_bd, b_tile, u_seg)
    out = jax.block_until_ready(out)
    ref = attention_net_ref(x, w1, b1, u)
    assert out.shape == (N, C)
    assert jnp.allclose(out, ref, atol=3e-2, rtol=3e-2), "f32 mismatch vs reference"

    # bf16 input path (native-bf16 MXU, f32 accumulation; kernel stays HBM-bound)
    x_bf16 = x.astype(jnp.bfloat16)
    out_bf = attention_net_pallas(x_bf16, w_bd, b_tile, u_seg)
    out_bf = jax.block_until_ready(out_bf)
    ref_bf = attention_net_ref(x_bf16.astype(jnp.float32), w1, b1, u)
    assert jnp.allclose(out_bf.astype(jnp.float32), ref_bf, atol=5e-2, rtol=5e-2), \
        "bf16 mismatch vs reference"

    print("KERNEL_OK")
</pallas_src>

<mosaic_0001>
module attributes {stable_mosaic.version = 11 : i64} {
  func.func @_attention_kernel(%arg0: i32, %arg1: memref<224x128xf32, #tpu.memory_space<vmem>>, %arg2: memref<128x64xf32, #tpu.memory_space<vmem>>, %arg3: memref<1x64xf32, #tpu.memory_space<vmem>>, %arg4: memref<64x4xf32, #tpu.memory_space<vmem>>, %arg5: memref<224x32xf32, #tpu.memory_space<vmem>>) attributes {dimension_semantics = [#tpu.dimension_semantics<parallel>], iteration_bounds = array<i64: 5>, scalar_prefetch = 0 : i64, scratch_operands = 0 : i64, tpu.core_type = #tpu.core_type<tc>, window_params = [{transform_indices = @transform_0, window_bounds = array<i64: 224, 128>}, {pipeline_mode = #tpu.pipeline_mode<synchronous>, transform_indices = @transform_1, window_bounds = array<i64: 128, 64>}, {pipeline_mode = #tpu.pipeline_mode<synchronous>, transform_indices = @transform_2, window_bounds = array<i64: 1, 64>}, {pipeline_mode = #tpu.pipeline_mode<synchronous>, transform_indices = @transform_3, window_bounds = array<i64: 64, 4>}, {transform_indices = @transform_4, window_bounds = array<i64: 224, 32>}]} {
    %c0 = arith.constant 0 : index
    %c0_0 = arith.constant 0 : index
    %0 = vector.load %arg1[%c0, %c0_0] : memref<224x128xf32, #tpu.memory_space<vmem>>, vector<224x128xf32>
    %c0_1 = arith.constant 0 : index
    %c0_2 = arith.constant 0 : index
    %1 = vector.load %arg2[%c0_1, %c0_2] : memref<128x64xf32, #tpu.memory_space<vmem>>, vector<128x64xf32>
    %cst = arith.constant dense<0.000000e+00> : vector<224x64xf32>
    %2 = tpu.matmul %0, %1, %cst {dimension_numbers = #tpu.dot_dimension_numbers<[1], [0], [0], [1], [0, 0, 1, 1], [], []>} : vector<224x128xf32>, vector<128x64xf32>, vector<224x64xf32> -> vector<224x64xf32>
    %c0_3 = arith.constant 0 : index
    %c0_4 = arith.constant 0 : index
    %3 = vector.load %arg3[%c0_3, %c0_4] : memref<1x64xf32, #tpu.memory_space<vmem>>, vector<1x64xf32>
    %4 = vector.broadcast %3 : vector<1x64xf32> to vector<224x64xf32>
    %5 = arith.addf %2, %4 : vector<224x64xf32>
    %6 = math.tanh %5 : vector<224x64xf32>
    %c0_5 = arith.constant 0 : index
    %c0_6 = arith.constant 0 : index
    %7 = vector.load %arg4[%c0_5, %c0_6] : memref<64x4xf32, #tpu.memory_space<vmem>>, vector<64x4xf32>
    %cst_7 = arith.constant dense<0.000000e+00> : vector<224x4xf32>
    %8 = tpu.matmul %6, %7, %cst_7 {dimension_numbers = #tpu.dot_dimension_numbers<[1], [0], [0], [1], [0, 0, 1, 1], [], []>} : vector<224x64xf32>, vector<64x4xf32>, vector<224x4xf32> -> vector<224x4xf32>
    %cst_8 = arith.constant dense<0xFF800000> : vector<224xf32>
    %9 = vector.multi_reduction <maximumf>, %8, %cst_8 [1] : vector<224x4xf32> to vector<224xf32>
    %10 = vector.shape_cast %9 : vector<224xf32> to vector<224x1xf32>
    %11 = vector.broadcast %10 : vector<224x1xf32> to vector<224x4xf32>
    %12 = arith.subf %8, %11 : vector<224x4xf32>
    %13 = math.exp %12 : vector<224x4xf32>
    %cst_9 = arith.constant dense<0.000000e+00> : vector<224xf32>
    %14 = vector.multi_reduction <add>, %13, %cst_9 [1] : vector<224x4xf32> to vector<224xf32>
    %15 = vector.shape_cast %14 : vector<224xf32> to vector<224x1xf32>
    %16 = tpu.reciprocal %15 {approx = true} : vector<224x1xf32> -> vector<224x1xf32>
    %17 = vector.broadcast %16 : vector<224x1xf32> to vector<224x4xf32>
    %18 = arith.mulf %13, %17 : vector<224x4xf32>
    %19 = vector.extract_strided_slice %0 {offsets = [0, 0], sizes = [224, 32], strides = [1, 1]} : vector<224x128xf32> to vector<224x32xf32>
    %20 = vector.extract_strided_slice %18 {offsets = [0, 0], sizes = [224, 1], strides = [1, 1]} : vector<224x4xf32> to vector<224x1xf32>
    %21 = vector.broadcast %20 : vector<224x1xf32> to vector<224x32xf32>
    %22 = arith.mulf %19, %21 : vector<224x32xf32>
    %23 = vector.extract_strided_slice %0 {offsets = [0, 32], sizes = [224, 32], strides = [1, 1]} : vector<224x128xf32> to vector<224x32xf32>
    %24 = vector.extract_strided_slice %18 {offsets = [0, 1], sizes = [224, 1], strides = [1, 1]} : vector<224x4xf32> to vector<224x1xf32>
    %25 = vector.broadcast %24 : vector<224x1xf32> to vector<224x32xf32>
    %26 = arith.mulf %23, %25 : vector<224x32xf32>
    %27 = arith.addf %22, %26 : vector<224x32xf32>
    %28 = vector.extract_strided_slice %0 {offsets = [0, 64], sizes = [224, 32], strides = [1, 1]} : vector<224x128xf32> to vector<224x32xf32>
    %29 = vector.extract_strided_slice %18 {offsets = [0, 2], sizes = [224, 1], strides = [1, 1]} : vector<224x4xf32> to vector<224x1xf32>
    %30 = vector.broadcast %29 : vector<224x1xf32> to vector<224x32xf32>
    %31 = arith.mulf %28, %30 : vector<224x32xf32>
    %32 = arith.addf %27, %31 : vector<224x32xf32>
    %33 = vector.extract_strided_slice %0 {offsets = [0, 96], sizes = [224, 32], strides = [1, 1]} : vector<224x128xf32> to vector<224x32xf32>
    %34 = vector.extract_strided_slice %18 {offsets = [0, 3], sizes = [224, 1], strides = [1, 1]} : vector<224x4xf32> to vector<224x1xf32>
    %35 = vector.broadcast %34 : vector<224x1xf32> to vector<224x32xf32>
    %36 = arith.mulf %33, %35 : vector<224x32xf32>
    %37 = arith.addf %32, %36 : vector<224x32xf32>
    %c0_10 = arith.constant 0 : index
    %c0_11 = arith.constant 0 : index
    %38 = vector.load %arg5[%c0_10, %c0_11] : memref<224x32xf32, #tpu.memory_space<vmem>>, vector<224x32xf32>
    tpu.vector_store %arg5[%c0_10, %c0_11], %37 {strides = array<i32>} : memref<224x32xf32, #tpu.memory_space<vmem>>, vector<224x32xf32>,
    return
  }
  func.func @transform_0(%arg0: i32) -> (i32, i32) {
    %c0_i32 = arith.constant 0 : i32
    %c0_i32_0 = arith.constant 0 : i32
    return %arg0, %c0_i32 : i32, i32
  }
  func.func @transform_1(%arg0: i32) -> (i32, i32) {
    %c0_i32 = arith.constant 0 : i32
    %c0_i32_0 = arith.constant 0 : i32
    %c0_i32_1 = arith.constant 0 : i32
    return %c0_i32, %c0_i32_0 : i32, i32
  }
  func.func @transform_2(%arg0: i32) -> (i32, i32) {
    %c0_i32 = arith.constant 0 : i32
    %c0_i32_0 = arith.constant 0 : i32
    %c0_i32_1 = arith.constant 0 : i32
    return %c0_i32, %c0_i32_0 : i32, i32
  }
  func.func @transform_3(%arg0: i32) -> (i32, i32) {
    %c0_i32 = arith.constant 0 : i32
    %c0_i32_0 = arith.constant 0 : i32
    %c0_i32_1 = arith.constant 0 : i32
    return %c0_i32, %c0_i32_0 : i32, i32
  }
  func.func @transform_4(%arg0: i32) -> (i32, i32) {
    %c0_i32 = arith.constant 0 : i32
    %c0_i32_0 = arith.constant 0 : i32
    return %arg0, %c0_i32 : i32, i32
  }
}

</mosaic_0001>

<llo_original>
// kernel: tpu_custom_call.1
$region0: #{tpu_custom_call.1}
  #allocation0 [shape = 'u32[]', space=smem, size = 0x4, offset = 0x4, fixed_abs, tag = 'smem constant byte address 0x4 - core index']
  #allocation1 [shape = 'u32[144,128]{1,0:T(1,128)}', space=vmem, size = 0x12000, scoped, tag = 'internal scratch']
  %s0 = inlined_call_operand.hbm [shape: f32[1000,128], index: 0, kind: input, shape index: {}]
  %s1 = inlined_call_operand.vmem [shape: f32[128,64], index: 1, kind: input, shape index: {}]
  %s2 = inlined_call_operand.vmem [shape: f32[1,64], index: 2, kind: input, shape index: {}]
  %s3 = inlined_call_operand.vmem [shape: f32[64,4], index: 3, kind: input, shape index: {}]
  %s4 = inlined_call_operand.vmem [shape: f32[1000,32], index: 4, kind: output, shape index: {}]
  %s5 = sld [smem:[#allocation0]]
  $region101: #{tpu_custom_call.1} parent=0
    _
  %s7 = ssub.s32 1, %s5
  %s8 = scalar_select 0, %s7, %s5
  $region1: #{tpu_custom_call.1} parent=0
    #allocation2 [shape = 'u8[229376]{0}', space=vmem, size = 0x38000, scoped, tag = 'input window, operand 0']
    #allocation3 [shape = 's32[2]{0}', space=sflag, size = 0x8, scoped, tag = 'scoped memory for tpu_custom_call.1']
    #allocation4 [shape = 'u8[229376]{0}', space=vmem, size = 0x38000, scoped, tag = 'output window, operand 0']
    %9 = vsyncpa [#allocation3], 0
    %s10 = scalar_lea.sflag [#allocation3], 1
    %11 = vsyncpa %s10, 0
    loop: start=0, step=1, limit=7
    $region2: #{tpu_custom_call.1} parent=1 // loop_pre_header
      _
    $region3: #{tpu_custom_call.1} parent=1 // loop_header
      %s13 = sphi 0, %s17
      %p14 = scmp.ge.s32.totalorder %s13, 7
      %s23 = sphi 0, %s25
      %s26 = sphi 0, %s23
      %s27 = sphi 0, %s26
      %s43 = sphi 0, %s27
      %s47 = sphi 0, %s47
      %s49 = sphi 0, %s47
      %s50 = sphi 0, %s49
      %s64 = sphi 0, %s50
      %s68 = sphi 0, %s68
      %s70 = sphi 0, %s68
      %s71 = sphi 0, %s70
      %s85 = sphi 0, %s71
      %s89 = sphi 0, %s89
      %s91 = sphi 0, %s89
      %s92 = sphi 0, %s91
      %s106 = sphi 0, %s92
      %s112 = sphi 0, %s114
      %s115 = sphi 0, %s112
      %s116 = sphi 0, %s115
      %s132 = sphi 0, %s116
    $region4: #{tpu_custom_call.1} parent=1 // loop_header_branch
      %16 = sbr.rel (%p14) target = $region8
    $region5: #{tpu_custom_call.1} parent=1 // loop_body
      %s18 = ssub.s32 %s13, 1
      %s19 = ssub.s32 %s13, 2
      %s20 = sadd.s32 %s13, 1
      %s21 = ssub.s32 %s13, %s20
      %p22 = scmp.eq.s32.totalorder %s21, 0
      %s24 = sadd.s32 %s23, 1
      %s25 = scalar_select %p22, %s23, %s24
      %p28 = pneg %p22
      %p29 = scmp.eq.s32.totalorder %s13, 4
      %p30 = por %p28, %p29
      %p31 = scmp.ne.s32.totalorder %s23, %s26
      %p32 = scmp.eq.s32.totalorder %s13, 0
      %p33 = por %p31, %p32
      %p34 = scmp.ne.s32.totalorder %s23, %s26
      %p35 = scmp.eq.s32.totalorder %s18, 4
      %p36 = por %p34, %p35
      %p37 = scmp.ne.s32.totalorder %s26, %s27
      %p38 = scmp.eq.s32.totalorder %s18, 0
      %p39 = por %p37, %p38
      %p40 = scmp.ne.s32.totalorder %s26, %s27
      %p41 = scmp.eq.s32.totalorder %s19, 4
      %p42 = por %p40, %p41
      %p44 = scmp.ne.s32.totalorder %s27, %s43
      %p45 = scmp.eq.s32.totalorder %s19, 0
      %p46 = por %p44, %p45
      %s48 = sadd.s32 %s47, 1
      %p51 = scmp.eq.s32.totalorder %s13, 4
      %p52 = scmp.ne.s32.totalorder %s47, %s49
      %p53 = scmp.eq.s32.totalorder %s13, 0
      %p54 = por %p52, %p53
      %p55 = scmp.ne.s32.totalorder %s47, %s49
      %p56 = scmp.eq.s32.totalorder %s18, 4
      %p57 = por %p55, %p56
      %p58 = scmp.ne.s32.totalorder %s49, %s50
      %p59 = scmp.eq.s32.totalorder %s18, 0
      %p60 = por %p58, %p59
      %p61 = scmp.ne.s32.totalorder %s49, %s50
      %p62 = scmp.eq.s32.totalorder %s19, 4
      %p63 = por %p61, %p62
      %p65 = scmp.ne.s32.totalorder %s50, %s64
      %p66 = scmp.eq.s32.totalorder %s19, 0
      %p67 = por %p65, %p66
      %s69 = sadd.s32 %s68, 1
      %p72 = scmp.eq.s32.totalorder %s13, 4
      %p73 = scmp.ne.s32.totalorder %s68, %s70
      %p74 = scmp.eq.s32.totalorder %s13, 0
      %p75 = por %p73, %p74
      %p76 = scmp.ne.s32.totalorder %s68, %s70
      %p77 = scmp.eq.s32.totalorder %s18, 4
      %p78 = por %p76, %p77
      %p79 = scmp.ne.s32.totalorder %s70, %s71
      %p80 = scmp.eq.s32.totalorder %s18, 0
      %p81 = por %p79, %p80
      %p82 = scmp.ne.s32.totalorder %s70, %s71
      %p83 = scmp.eq.s32.totalorder %s19, 4
      %p84 = por %p82, %p83
      %p86 = scmp.ne.s32.totalorder %s71, %s85
      %p87 = scmp.eq.s32.totalorder %s19, 0
      %p88 = por %p86, %p87
      %s90 = sadd.s32 %s89, 1
      %p93 = scmp.eq.s32.totalorder %s13, 4
      %p94 = scmp.ne.s32.totalorder %s89, %s91
      %p95 = scmp.eq.s32.totalorder %s13, 0
      %p96 = por %p94, %p95
      %p97 = scmp.ne.s32.totalorder %s89, %s91
      %p98 = scmp.eq.s32.totalorder %s18, 4
      %p99 = por %p97, %p98
      %p100 = scmp.ne.s32.totalorder %s91, %s92
      %p101 = scmp.eq.s32.totalorder %s18, 0
      %p102 = por %p100, %p101
      %p103 = scmp.ne.s32.totalorder %s91, %s92
      %p104 = scmp.eq.s32.totalorder %s19, 4
      %p105 = por %p103, %p104
      %p107 = scmp.ne.s32.totalorder %s92, %s106
      %p108 = scmp.eq.s32.totalorder %s19, 0
      %p109 = por %p107, %p108
      %s110 = ssub.s32 %s13, %s20
      %p111 = scmp.eq.s32.totalorder %s110, 0
      %s113 = sadd.s32 %s112, 1
      %s114 = scalar_select %p111, %s112, %s113
      %p117 = pneg %p111
      %p118 = scmp.eq.s32.totalorder %s13, 4
      %p119 = por %p117, %p118
      %p120 = scmp.ne.s32.totalorder %s112, %s115
      %p121 = scmp.eq.s32.totalorder %s13, 0
      %p122 = por %p120, %p121
      %p123 = scmp.ne.s32.totalorder %s112, %s115
      %p124 = scmp.eq.s32.totalorder %s18, 4
      %p125 = por %p123, %p124
      %p126 = scmp.ne.s32.totalorder %s115, %s116
      %p127 = scmp.eq.s32.totalorder %s18, 0
      %p128 = por %p126, %p127
      %p129 = scmp.ne.s32.totalorder %s115, %s116
      %p130 = scmp.eq.s32.totalorder %s19, 4
      %p131 = por %p129, %p130
      %p133 = scmp.ne.s32.totalorder %s116, %s132
      %p134 = scmp.eq.s32.totalorder %s19, 0
      %p135 = por %p133, %p134
      %p136 = scmp.le.s32.totalorder 1, %s13
      %p137 = scmp.lt.s32.totalorder %s13, 6
      %p138 = pnand %p136, %p137
      %p139 = pneg %p138
      // Predicated region
      $region9: #{tpu_custom_call.1} parent=5 // pred_check
        _
      $region10: #{tpu_custom_call.1} parent=5 // pred_check_branch
        %141 = sbr.rel (%p138) target = $region12
      $region11: #{tpu_custom_call.1} parent=5 // pred_region
        %s142 = ssub.s32 %s13, 1
        // Predicated region
        $region13: #{tpu_custom_call.1} parent=11 // pred_check
          %p143 = pneg %p60
        $region14: #{tpu_custom_call.1} parent=11 // pred_check_branch
          %145 = sbr.rel (%p143) target = $region16
        $region15: #{tpu_custom_call.1} parent=11 // pred_region
          _
        $region16: #{tpu_custom_call.1} parent=11 // pred_fallthru
          _
        // Predicated region
        $region17: #{tpu_custom_call.1} parent=11 // pred_check
          %p146 = pneg %p81
        $region18: #{tpu_custom_call.1} parent=11 // pred_check_branch
          %148 = sbr.rel (%p146) target = $region20
        $region19: #{tpu_custom_call.1} parent=11 // pred_region
          _
        $region20: #{tpu_custom_call.1} parent=11 // pred_fallthru
          _
        // Predicated region
        $region21: #{tpu_custom_call.1} parent=11 // pred_check
          %p149 = pneg %p102
        $region22: #{tpu_custom_call.1} parent=11 // pred_check_branch
          %151 = sbr.rel (%p149) target = $region24
        $region23: #{tpu_custom_call.1} parent=11 // pred_region
          _
        $region24: #{tpu_custom_call.1} parent=11 // pred_fallthru
          _
      $region12: #{tpu_custom_call.1} parent=5 // pred_fallthru
        _
      %p152 = scmp.lt.s32.totalorder %s13, 5
      // Predicated region
      $region25: #{tpu_custom_call.1} parent=5 // pred_check
        %p153 = pneg %p152
      $region26: #{tpu_custom_call.1} parent=5 // pred_check_branch
        %155 = sbr.rel (%p153) target = $region28
      $region27: #{tpu_custom_call.1} parent=5 // pred_region
        // Predicated region
        $region29: #{tpu_custom_call.1} parent=27 // pred_check
          %p156 = pneg %p33
        $region30: #{tpu_custom_call.1} parent=27 // pred_check_branch
          %158 = sbr.rel (%p156) target = $region32
        $region31: #{tpu_custom_call.1} parent=27 // pred_region
          %s159 = sand.u32 %s23, 1
          %s160 = scalar_lea.sflag [#allocation3], %s159
          %s161 = sand.u32 %s23, 1
          %s162 = smul.addr %s161, 224
          %s163 = scalar_lea.vmem [#allocation2], %s162
          %s164 = smul.u32 28, %s13
          %s165 = ssub.s32 125, %s164
          %p166 = scmp.lt.s32.totalorder %s165, 28
          %s167 = scalar_select %p166, %s165, 28
          %s168 = smul.u32 128, %s167
          %s170 = ssub.s32 3584, %s168
          %171 = vsyncadd %s160, %s170
          %p172 = scmp.ne.s32.totalorder 0, %s168
          %s173 = smul.addr %s164, 128
          %s174 = scalar_lea.hbm %s0, %s173
          %s175 = smul.u32 8, %s167
          %s176 = sshll.u32 %s163, 4
          %s177 = int_to_ptr.vmem [resolvable:$true] %s176
          %s178 = sshll.u32 %s175, 4
          %182 = dma.hbm_to_vmem [thread:$0]  (%p172), %s174, %s178, %s177, %s160, 128, 128, 8
        $region32: #{tpu_custom_call.1} parent=27 // pred_fallthru
          _
      $region28: #{tpu_custom_call.1} parent=5 // pred_fallthru
        _
      %p183 = scmp.le.s32.totalorder 1, %s13
      %p184 = scmp.lt.s32.totalorder %s13, 6
      %p185 = pnand %p183, %p184
      %p186 = pneg %p185
      // Predicated region
      $region33: #{tpu_custom_call.1} parent=5 // pred_check
        _
      $region34: #{tpu_custom_call.1} parent=5 // pred_check_branch
        %188 = sbr.rel (%p185) target = $region36
      $region35: #{tpu_custom_call.1} parent=5 // pred_region
        %s189 = ssub.s32 %s13, 1
        %s190 = sand.u32 %s26, 1
        %s191 = scalar_lea.sflag [#allocation3], %s190
        %s192 = sand.u32 %s26, 1
        %s193 = smul.addr %s192, 224
        %s194 = scalar_lea.vmem [#allocation2], %s193
        // Predicated region
        $region37: #{tpu_custom_call.1} parent=35 // pred_check
          %p195 = pneg %p39
        $region38: #{tpu_custom_call.1} parent=35 // pred_check_branch
          %197 = sbr.rel (%p195) target = $region40
        $region39: #{tpu_custom_call.1} parent=35 // pred_region
          %198 = dma.done %s191, 3584
        $region40: #{tpu_custom_call.1} parent=35 // pred_fallthru
          _
        %s199 = sand.u32 %s26, 1
        %s200 = scalar_lea.sflag [#allocation3], %s199
        %s201 = sand.u32 %s26, 1
        %s202 = smul.addr %s201, 224
        %s203 = scalar_lea.vmem [#allocation2], %s202
        %p204 = pneg %p39
        %p205 = pneg %p36
        %p206 = pneg %p60
        %p207 = pneg %p57
        %p208 = pneg %p81
        %p209 = pneg %p78
        %p210 = pneg %p102
        %p211 = pneg %p99
        %p212 = pneg %p128
        %p213 = pneg %p125
        %s214 = sand.u32 %s115, 1
        %s215 = sand.u32 %s115, 1
        %s216 = smul.addr %s215, 224
        %s217 = scalar_lea.vmem [#allocation4], %s216
        %s218 = smul.u32 28, %s18
        %s219 = ssub.s32 125, %s218
        %p220 = scmp.lt.s32.totalorder %s219, 28
        %s221 = scalar_select %p220, %s219, 28
        %s222 = smul.u32 128, %s221
        %s223 = smul.u32 28, %s18
        %s224 = ssub.s32 125, %s223
        %p225 = scmp.lt.s32.totalorder %s224, 28
        %s226 = scalar_select %p225, %s224, 28
        %s227 = smul.u32 128, %s226
        %v228 = vld [vmem:[%s194] sm:$0xff]
        %v229 = vld [vmem:[%s194 + $0x8] sm:$0xff]
        %v230 = vld [vmem:[%s194 + $0x10] sm:$0xff]
        %v231 = vld [vmem:[%s194 + $0x18] sm:$0xff]
        %v232 = vld [vmem:[%s194 + $0x20] sm:$0xff]
        %v233 = vld [vmem:[%s194 + $0x28] sm:$0xff]
        %v234 = vld [vmem:[%s194 + $0x30] sm:$0xff]
        %v235 = vld [vmem:[%s194 + $0x38] sm:$0xff]
        %v236 = vld [vmem:[%s194 + $0x40] sm:$0xff]
        %v237 = vld [vmem:[%s194 + $0x48] sm:$0xff]
        %v238 = vld [vmem:[%s194 + $0x50] sm:$0xff]
        %v239 = vld [vmem:[%s194 + $0x58] sm:$0xff]
        %v240 = vld [vmem:[%s194 + $0x60] sm:$0xff]
        %v241 = vld [vmem:[%s194 + $0x68] sm:$0xff]
        %v242 = vld [vmem:[%s194 + $0x70] sm:$0xff]
        %v243 = vld [vmem:[%s194 + $0x78] sm:$0xff]
        %v244 = vld [vmem:[%s194 + $0x80] sm:$0xff]
        %v245 = vld [vmem:[%s194 + $0x88] sm:$0xff]
        %v246 = vld [vmem:[%s194 + $0x90] sm:$0xff]
        %v247 = vld [vmem:[%s194 + $0x98] sm:$0xff]
        %v248 = vld [vmem:[%s194 + $0xa0] sm:$0xff]
        %v249 = vld [vmem:[%s194 + $0xa8] sm:$0xff]
        %v250 = vld [vmem:[%s194 + $0xb0] sm:$0xff]
        %v251 = vld [vmem:[%s194 + $0xb8] sm:$0xff]
        %v252 = vld [vmem:[%s194 + $0xc0] sm:$0xff]
        %v253 = vld [vmem:[%s194 + $0xc8] sm:$0xff]
        %v254 = vld [vmem:[%s194 + $0xd0] sm:$0xff]
        %v255 = vld [vmem:[%s194 + $0xd8] sm:$0xff]
        %v256 = vld [vmem:[%s1] sm:$0xff]
        %v257 = vld [vmem:[%s1 + $0x8] sm:$0xff]
        %v258 = vld [vmem:[%s1 + $0x10] sm:$0xff]
        %v259 = vld [vmem:[%s1 + $0x18] sm:$0xff]
        %v260 = vld [vmem:[%s1 + $0x20] sm:$0xff]
        %v261 = vld [vmem:[%s1 + $0x28] sm:$0xff]
        %v262 = vld [vmem:[%s1 + $0x30] sm:$0xff]
        %v263 = vld [vmem:[%s1 + $0x38] sm:$0xff]
        %v264 = vld [vmem:[%s1 + $0x40] sm:$0xff]
        %v265 = vld [vmem:[%s1 + $0x48] sm:$0xff]
        %v266 = vld [vmem:[%s1 + $0x50] sm:$0xff]
        %v267 = vld [vmem:[%s1 + $0x58] sm:$0xff]
        %v268 = vld [vmem:[%s1 + $0x60] sm:$0xff]
        %v269 = vld [vmem:[%s1 + $0x68] sm:$0xff]
        %v270 = vld [vmem:[%s1 + $0x70] sm:$0xff]
        %v271 = vld [vmem:[%s1 + $0x78] sm:$0xff]
        %v272 = vld [vmem:[%s2] sm:$0x1]
        %v274 = vlaneseq
        %v275 = vshrl.u32 %v274, 7
        %v276 = vsub.s32 0, %v275
        %v277 = vrot.slane %v272, %v276
        %279 = vmatprep.subr.mxu0 0.0
        %280 = vmatpush1.msra.mxu0 %v256
        %281 = vmatprep.subr.mxu0 0.0
        %282 = vmatpush1.msra.mxu0 %v257
        %283 = vmatprep.subr.mxu0 0.0
        %284 = vmatpush1.msra.mxu0 %v258
        %285 = vmatprep.subr.mxu0 0.0
        %286 = vmatpush1.msra.mxu0 %v259
        %287 = vmatprep.subr.mxu0 0.0
        %288 = vmatpush1.msra.mxu0 %v260
        %289 = vmatprep.subr.mxu0 0.0
        %290 = vmatpush1.msra.mxu0 %v261
        %291 = vmatprep.subr.mxu0 0.0
        %292 = vmatpush1.msra.mxu0 %v262
        %293 = vmatprep.subr.mxu0 0.0
        %294 = vmatpush1.msra.mxu0 %v263
        %295 = vmatprep.subr.mxu0 0.0
        %296 = vmatpush1.msra.mxu0 %v264
        %297 = vmatprep.subr.mxu0 0.0
        %298 = vmatpush1.msra.mxu0 %v265
        %299 = vmatprep.subr.mxu0 0.0
        %300 = vmatpush1.msra.mxu0 %v266
        %301 = vmatprep.subr.mxu0 0.0
        %302 = vmatpush1.msra.mxu0 %v267
        %303 = vmatprep.subr.mxu0 0.0
        %304 = vmatpush1.msra.mxu0 %v268
        %305 = vmatprep.subr.mxu0 0.0
        %306 = vmatpush1.msra.mxu0 %v269
        %307 = vmatprep.subr.mxu0 0.0
        %308 = vmatpush1.msra.mxu0 %v270
        %309 = vmatprep.subr.mxu0 0.0
        %310 = vmatpush1.msra.mxu0 %v271
        %311 = vmatprep.subr.mxu0 0.0
        %312 = vmatpush1.msra.mxu0 0.0
        %313 = vmatprep.subr.mxu0 0.0
        %314 = vmatpush1.msra.mxu0 0.0
        %315 = vmatprep.subr.mxu0 0.0
        %316 = vmatpush1.msra.mxu0 0.0
        %317 = vmatprep.subr.mxu0 0.0
        %318 = vmatpush1.msra.mxu0 0.0
        %319 = vmatprep.subr.mxu0 0.0
        %320 = vmatpush1.msra.mxu0 0.0
        %321 = vmatprep.subr.mxu0 0.0
        %322 = vmatpush1.msra.mxu0 0.0
        %323 = vmatprep.subr.mxu0 0.0
        %324 = vmatpush1.msra.mxu0 0.0
        %325 = vmatprep.subr.mxu0 0.0
        %326 = vmatpush1.msra.mxu0 0.0
        %327 = vmatprep.subr.mxu0 0.0
        %328 = vmatpush1.msra.mxu0 0.0
        %329 = vmatprep.subr.mxu0 0.0
        %330 = vmatpush1.msra.mxu0 0.0
        %331 = vmatprep.subr.mxu0 0.0
        %332 = vmatpush1.msra.mxu0 0.0
        %333 = vmatprep.subr.mxu0 0.0
        %334 = vmatpush1.msra.mxu0 0.0
        %335 = vmatprep.subr.mxu0 0.0
        %336 = vmatpush1.msra.mxu0 0.0
        %337 = vmatprep.subr.mxu0 0.0
        %338 = vmatpush1.msra.mxu0 0.0
        %339 = vmatprep.subr.mxu0 0.0
        %340 = vmatpush1.msra.mxu0 0.0
        %341 = vmatprep.subr.mxu0 0.0
        %342 = vmatpush1.msra.mxu0 0.0
        %343 = vmatprep.mubr.f32.mxu0 0.0
        %344 = vmatmul.mubr.f32.gmra.mrb[0].mxu0 %v228
        %v345 = vpop.f32.mrb[0].mxu0
        %v346 = vadd.f32 %v277, %v345
        %v347 = vpop.f32.mrb[0].mxu0
        %348 = vmatprep.mubr.f32.mxu0 0.0
        %349 = vmatmul.mubr.f32.gmra.mrb[0].mxu0 %v229
        %v350 = vpop.f32.mrb[0].mxu0
        %v351 = vadd.f32 %v277, %v350
        %v352 = vpop.f32.mrb[0].mxu0
        %353 = vmatprep.mubr.f32.mxu0 0.0
        %354 = vmatmul.mubr.f32.gmra.mrb[0].mxu0 %v230
        %v355 = vpop.f32.mrb[0].mxu0
        %v356 = vadd.f32 %v277, %v355
        %v357 = vpop.f32.mrb[0].mxu0
        %358 = vmatprep.mubr.f32.mxu0 0.0
        %359 = vmatmul.mubr.f32.gmra.mrb[0].mxu0 %v231
        %v360 = vpop.f32.mrb[0].mxu0
        %v361 = vadd.f32 %v277, %v360
        %v362 = vpop.f32.mrb[0].mxu0
        %363 = vmatprep.mubr.f32.mxu0 0.0
        %364 = vmatmul.mubr.f32.gmra.mrb[0].mxu0 %v232
        %v365 = vpop.f32.mrb[0].mxu0
        %v366 = vadd.f32 %v277, %v365
        %v367 = vpop.f32.mrb[0].mxu0
        %368 = vmatprep.mubr.f32.mxu0 0.0
        %369 = vmatmul.mubr.f32.gmra.mrb[0].mxu0 %v233
        %v370 = vpop.f32.mrb[0].mxu0
        %v371 = vadd.f32 %v277, %v370
        %v372 = vpop.f32.mrb[0].mxu0
        %373 = vmatprep.mubr.f32.mxu0 0.0
        %374 = vmatmul.mubr.f32.gmra.mrb[0].mxu0 %v234
        %v375 = vpop.f32.mrb[0].mxu0
        %v376 = vadd.f32 %v277, %v375
        %v377 = vpop.f32.mrb[0].mxu0
        %378 = vmatprep.mubr.f32.mxu0 0.0
        %379 = vmatmul.mubr.f32.gmra.mrb[0].mxu0 %v235
        %v380 = vpop.f32.mrb[0].mxu0
        %v381 = vadd.f32 %v277, %v380
        %v382 = vpop.f32.mrb[0].mxu0
        %383 = vmatprep.mubr.f32.mxu0 0.0
        %384 = vmatmul.mubr.f32.gmra.mrb[0].mxu0 %v236
        %v385 = vpop.f32.mrb[0].mxu0
        %v386 = vadd.f32 %v277, %v385
        %v387 = vpop.f32.mrb[0].mxu0
        %388 = vmatprep.mubr.f32.mxu0 0.0
        %389 = vmatmul.mubr.f32.gmra.mrb[0].mxu0 %v237
        %v390 = vpop.f32.mrb[0].mxu0
        %v391 = vadd.f32 %v277, %v390
        %v392 = vpop.f32.mrb[0].mxu0
        %393 = vmatprep.mubr.f32.mxu0 0.0
        %394 = vmatmul.mubr.f32.gmra.mrb[0].mxu0 %v238
        %v395 = vpop.f32.mrb[0].mxu0
        %v396 = vadd.f32 %v277, %v395
        %v397 = vpop.f32.mrb[0].mxu0
        %398 = vmatprep.mubr.f32.mxu0 0.0
        %399 = vmatmul.mubr.f32.gmra.mrb[0].mxu0 %v239
        %v400 = vpop.f32.mrb[0].mxu0
        %v401 = vadd.f32 %v277, %v400
        %v402 = vpop.f32.mrb[0].mxu0
        %403 = vmatprep.mubr.f32.mxu0 0.0
        %404 = vmatmul.mubr.f32.gmra.mrb[0].mxu0 %v240
        %v405 = vpop.f32.mrb[0].mxu0
        %v406 = vadd.f32 %v277, %v405
        %v407 = vpop.f32.mrb[0].mxu0
        %408 = vmatprep.mubr.f32.mxu0 0.0
        %409 = vmatmul.mubr.f32.gmra.mrb[0].mxu0 %v241
        %v410 = vpop.f32.mrb[0].mxu0
        %v411 = vadd.f32 %v277, %v410
        %v412 = vpop.f32.mrb[0].mxu0
        %413 = vmatprep.mubr.f32.mxu0 0.0
        %414 = vmatmul.mubr.f32.gmra.mrb[0].mxu0 %v242
        %v415 = vpop.f32.mrb[0].mxu0
        %v416 = vadd.f32 %v277, %v415
        %v417 = vpop.f32.mrb[0].mxu0
        %418 = vmatprep.mubr.f32.mxu0 0.0
        %419 = vmatmul.mubr.f32.gmra.mrb[0].mxu0 %v243
        %v420 = vpop.f32.mrb[0].mxu0
        %v421 = vadd.f32 %v277, %v420
        %v422 = vpop.f32.mrb[0].mxu0
        %423 = vmatprep.mubr.f32.mxu0 0.0
        %424 = vmatmul.mubr.f32.gmra.mrb[0].mxu0 %v244
        %v425 = vpop.f32.mrb[0].mxu0
        %v426 = vadd.f32 %v277, %v425
        %v427 = vpop.f32.mrb[0].mxu0
        %428 = vmatprep.mubr.f32.mxu0 0.0
        %429 = vmatmul.mubr.f32.gmra.mrb[0].mxu0 %v245
        %v430 = vpop.f32.mrb[0].mxu0
        %v431 = vadd.f32 %v277, %v430
        %v432 = vpop.f32.mrb[0].mxu0
        %433 = vmatprep.mubr.f32.mxu0 0.0
        %434 = vmatmul.mubr.f32.gmra.mrb[0].mxu0 %v246
        %v435 = vpop.f32.mrb[0].mxu0
        %v436 = vadd.f32 %v277, %v435
        %v437 = vpop.f32.mrb[0].mxu0
        %438 = vmatprep.mubr.f32.mxu0 0.0
        %439 = vmatmul.mubr.f32.gmra.mrb[0].mxu0 %v247
        %v440 = vpop.f32.mrb[0].mxu0
        %v441 = vadd.f32 %v277, %v440
        %v442 = vpop.f32.mrb[0].mxu0
        %443 = vmatprep.mubr.f32.mxu0 0.0
        %444 = vmatmul.mubr.f32.gmra.mrb[0].mxu0 %v248
        %v445 = vpop.f32.mrb[0].mxu0
        %v446 = vadd.f32 %v277, %v445
        %v447 = vpop.f32.mrb[0].mxu0
        %448 = vmatprep.mubr.f32.mxu0 0.0
        %449 = vmatmul.mubr.f32.gmra.mrb[0].mxu0 %v249
        %v450 = vpop.f32.mrb[0].mxu0
        %v451 = vadd.f32 %v277, %v450
        %v452 = vpop.f32.mrb[0].mxu0
        %453 = vmatprep.mubr.f32.mxu0 0.0
        %454 = vmatmul.mubr.f32.gmra.mrb[0].mxu0 %v250
        %v455 = vpop.f32.mrb[0].mxu0
        %v456 = vadd.f32 %v277, %v455
        %v457 = vpop.f32.mrb[0].mxu0
        %458 = vmatprep.mubr.f32.mxu0 0.0
        %459 = vmatmul.mubr.f32.gmra.mrb[0].mxu0 %v251
        %v460 = vpop.f32.mrb[0].mxu0
        %v461 = vadd.f32 %v277, %v460
        %v462 = vpop.f32.mrb[0].mxu0
        %463 = vmatprep.mubr.f32.mxu0 0.0
        %464 = vmatmul.mubr.f32.gmra.mrb[0].mxu0 %v252
        %v465 = vpop.f32.mrb[0].mxu0
        %v466 = vadd.f32 %v277, %v465
        %v467 = vpop.f32.mrb[0].mxu0
        %468 = vmatprep.mubr.f32.mxu0 0.0
        %469 = vmatmul.mubr.f32.gmra.mrb[0].mxu0 %v253
        %v470 = vpop.f32.mrb[0].mxu0
        %v471 = vadd.f32 %v277, %v470
        %v472 = vpop.f32.mrb[0].mxu0
        %473 = vmatprep.mubr.f32.mxu0 0.0
        %474 = vmatmul.mubr.f32.gmra.mrb[0].mxu0 %v254
        %v475 = vpop.f32.mrb[0].mxu0
        %v476 = vadd.f32 %v277, %v475
        %v477 = vpop.f32.mrb[0].mxu0
        %478 = vmatprep.mubr.f32.mxu0 0.0
        %479 = vmatmul.mubr.f32.gmra.mrb[0].mxu0 %v255
        %v480 = vpop.f32.mrb[0].mxu0
        %v481 = vadd.f32 %v277, %v480
        %v482 = vpop.f32.mrb[0].mxu0
        %483 = vdwg.mxu0
        %v484 = vtanh.pop %v346
        %v485 = vtanh.pop %v351
        %v486 = vtanh.pop %v356
        %v487 = vtanh.pop %v361
        %v488 = vtanh.pop %v366
        %v489 = vtanh.pop %v371
        %v490 = vtanh.pop %v376
        %v491 = vtanh.pop %v381
        %v492 = vtanh.pop %v386
        %v493 = vtanh.pop %v391
        %v494 = vtanh.pop %v396
        %v495 = vtanh.pop %v401
        %v496 = vtanh.pop %v406
        %v497 = vtanh.pop %v411
        %v498 = vtanh.pop %v416
        %v499 = vtanh.pop %v421
        %v500 = vtanh.pop %v426
        %v501 = vtanh.pop %v431
        %v502 = vtanh.pop %v436
        %v503 = vtanh.pop %v441
        %v504 = vtanh.pop %v446
        %v505 = vtanh.pop %v451
        %v506 = vtanh.pop %v456
        %v507 = vtanh.pop %v461
        %v508 = vtanh.pop %v466
        %v509 = vtanh.pop %v471
        %v510 = vtanh.pop %v476
        %v511 = vtanh.pop %v481
        %v512 = vld [vmem:[%s3] sm:$0xff]
        %v513 = vld [vmem:[%s3 + $0x8] sm:$0xff]
        %v514 = vld [vmem:[%s3 + $0x10] sm:$0xff]
        %v515 = vld [vmem:[%s3 + $0x18] sm:$0xff]
        %v516 = vld [vmem:[%s3 + $0x20] sm:$0xff]
        %v517 = vld [vmem:[%s3 + $0x28] sm:$0xff]
        %v518 = vld [vmem:[%s3 + $0x30] sm:$0xff]
        %v519 = vld [vmem:[%s3 + $0x38] sm:$0xff]
        %vm520 = vcmask 523264
        %v522 = vsel %vm520, %v484, 0
        %v525 = vsel %vm520, %v485, 0
        %v528 = vsel %vm520, %v486, 0
        %v531 = vsel %vm520, %v487, 0
        %v534 = vsel %vm520, %v488, 0
        %v537 = vsel %vm520, %v489, 0
        %v540 = vsel %vm520, %v490, 0
        %v543 = vsel %vm520, %v491, 0
        %v546 = vsel %vm520, %v492, 0
        %v549 = vsel %vm520, %v493, 0
        %v552 = vsel %vm520, %v494, 0
        %v555 = vsel %vm520, %v495, 0
        %v558 = vsel %vm520, %v496, 0
        %v561 = vsel %vm520, %v497, 0
        %v564 = vsel %vm520, %v498, 0
        %v567 = vsel %vm520, %v499, 0
        %v570 = vsel %vm520, %v500, 0
        %v573 = vsel %vm520, %v501, 0
        %v576 = vsel %vm520, %v502, 0
        %v579 = vsel %vm520, %v503, 0
        %v582 = vsel %vm520, %v504, 0
        %v585 = vsel %vm520, %v505, 0
        %v588 = vsel %vm520, %v506, 0
        %v591 = vsel %vm520, %v507, 0
        %v594 = vsel %vm520, %v508, 0
        %v597 = vsel %vm520, %v509, 0
        %v600 = vsel %vm520, %v510, 0
        %v603 = vsel %vm520, %v511, 0
        %605 = vmatprep.subr.mxu0 0.0
        %606 = vmatpush1.msra.mxu0 %v512
        %607 = vmatprep.subr.mxu0 0.0
        %608 = vmatpush1.msra.mxu0 %v513
        %609 = vmatprep.subr.mxu0 0.0
        %610 = vmatpush1.msra.mxu0 %v514
        %611 = vmatprep.subr.mxu0 0.0
        %612 = vmatpush1.msra.mxu0 %v515
        %613 = vmatprep.subr.mxu0 0.0
        %614 = vmatpush1.msra.mxu0 %v516
        %615 = vmatprep.subr.mxu0 0.0
        %616 = vmatpush1.msra.mxu0 %v517
        %617 = vmatprep.subr.mxu0 0.0
        %618 = vmatpush1.msra.mxu0 %v518
        %619 = vmatprep.subr.mxu0 0.0
        %620 = vmatpush1.msra.mxu0 %v519
        %621 = vmatprep.subr.mxu0 0.0
        %622 = vmatpush1.msra.mxu0 0.0
        %623 = vmatprep.subr.mxu0 0.0
        %624 = vmatpush1.msra.mxu0 0.0
        %625 = vmatprep.subr.mxu0 0.0
        %626 = vmatpush1.msra.mxu0 0.0
        %627 = vmatprep.subr.mxu0 0.0
        %628 = vmatpush1.msra.mxu0 0.0
        %629 = vmatprep.subr.mxu0 0.0
        %630 = vmatpush1.msra.mxu0 0.0
        %631 = vmatprep.subr.mxu0 0.0
        %632 = vmatpush1.msra.mxu0 0.0
        %633 = vmatprep.subr.mxu0 0.0
        %634 = vmatpush1.msra.mxu0 0.0
        %635 = vmatprep.subr.mxu0 0.0
        %636 = vmatpush1.msra.mxu0 0.0
        %637 = vmatprep.subr.mxu0 0.0
        %638 = vmatpush1.msra.mxu0 0.0
        %639 = vmatprep.subr.mxu0 0.0
        %640 = vmatpush1.msra.mxu0 0.0
        %641 = vmatprep.subr.mxu0 0.0
        %642 = vmatpush1.msra.mxu0 0.0
        %643 = vmatprep.subr.mxu0 0.0
        %644 = vmatpush1.msra.mxu0 0.0
        %645 = vmatprep.subr.mxu0 0.0
        %646 = vmatpush1.msra.mxu0 0.0
        %647 = vmatprep.subr.mxu0 0.0
        %648 = vmatpush1.msra.mxu0 0.0
        %649 = vmatprep.subr.mxu0 0.0
        %650 = vmatpush1.msra.mxu0 0.0
        %651 = vmatprep.subr.mxu0 0.0
        %652 = vmatpush1.msra.mxu0 0.0
        %653 = vmatprep.subr.mxu0 0.0
        %654 = vmatpush1.msra.mxu0 0.0
        %655 = vmatprep.subr.mxu0 0.0
        %656 = vmatpush1.msra.mxu0 0.0
        %657 = vmatprep.subr.mxu0 0.0
        %658 = vmatpush1.msra.mxu0 0.0
        %659 = vmatprep.subr.mxu0 0.0
        %660 = vmatpush1.msra.mxu0 0.0
        %661 = vmatprep.subr.mxu0 0.0
        %662 = vmatpush1.msra.mxu0 0.0
        %663 = vmatprep.subr.mxu0 0.0
        %664 = vmatpush1.msra.mxu0 0.0
        %665 = vmatprep.subr.mxu0 0.0
        %666 = vmatpush1.msra.mxu0 0.0
        %667 = vmatprep.subr.mxu0 0.0
        %668 = vmatpush1.msra.mxu0 0.0
        %669 = vmatprep.mubr.f32.mxu0 0.0
        %670 = vmatmul.mubr.f32.gmra.mrb[0].mxu0 %v522
        %v671 = vpop.f32.mrb[0].mxu0
        %v672 = vadd.f32 0.0, %v671
        %v673 = vpop.f32.mrb[0].mxu0
        %674 = vmatprep.mubr.f32.mxu0 0.0
        %675 = vmatmul.mubr.f32.gmra.mrb[0].mxu0 %v525
        %v676 = vpop.f32.mrb[0].mxu0
        %v677 = vadd.f32 0.0, %v676
        %v678 = vpop.f32.mrb[0].mxu0
        %679 = vmatprep.mubr.f32.mxu0 0.0
        %680 = vmatmul.mubr.f32.gmra.mrb[0].mxu0 %v528
        %v681 = vpop.f32.mrb[0].mxu0
        %v682 = vadd.f32 0.0, %v681
        %v683 = vpop.f32.mrb[0].mxu0
        %684 = vmatprep.mubr.f32.mxu0 0.0
        %685 = vmatmul.mubr.f32.gmra.mrb[0].mxu0 %v531
        %v686 = vpop.f32.mrb[0].mxu0
        %v687 = vadd.f32 0.0, %v686
        %v688 = vpop.f32.mrb[0].mxu0
        %689 = vmatprep.mubr.f32.mxu0 0.0
        %690 = vmatmul.mubr.f32.gmra.mrb[0].mxu0 %v534
        %v691 = vpop.f32.mrb[0].mxu0
        %v692 = vadd.f32 0.0, %v691
        %v693 = vpop.f32.mrb[0].mxu0
        %694 = vmatprep.mubr.f32.mxu0 0.0
        %695 = vmatmul.mubr.f32.gmra.mrb[0].mxu0 %v537
        %v696 = vpop.f32.mrb[0].mxu0
        %v697 = vadd.f32 0.0, %v696
        %v698 = vpop.f32.mrb[0].mxu0
        %699 = vmatprep.mubr.f32.mxu0 0.0
        %700 = vmatmul.mubr.f32.gmra.mrb[0].mxu0 %v540
        %v701 = vpop.f32.mrb[0].mxu0
        %v702 = vadd.f32 0.0, %v701
        %v703 = vpop.f32.mrb[0].mxu0
        %704 = vmatprep.mubr.f32.mxu0 0.0
        %705 = vmatmul.mubr.f32.gmra.mrb[0].mxu0 %v543
        %v706 = vpop.f32.mrb[0].mxu0
        %v707 = vadd.f32 0.0, %v706
        %v708 = vpop.f32.mrb[0].mxu0
        %709 = vmatprep.mubr.f32.mxu0 0.0
        %710 = vmatmul.mubr.f32.gmra.mrb[0].mxu0 %v546
        %v711 = vpop.f32.mrb[0].mxu0
        %v712 = vadd.f32 0.0, %v711
        %v713 = vpop.f32.mrb[0].mxu0
        %714 = vmatprep.mubr.f32.mxu0 0.0
        %715 = vmatmul.mubr.f32.gmra.mrb[0].mxu0 %v549
        %v716 = vpop.f32.mrb[0].mxu0
        %v717 = vadd.f32 0.0, %v716
        %v718 = vpop.f32.mrb[0].mxu0
        %719 = vmatprep.mubr.f32.mxu0 0.0
        %720 = vmatmul.mubr.f32.gmra.mrb[0].mxu0 %v552
        %v721 = vpop.f32.mrb[0].mxu0
        %v722 = vadd.f32 0.0, %v721
        %v723 = vpop.f32.mrb[0].mxu0
        %724 = vmatprep.mubr.f32.mxu0 0.0
        %725 = vmatmul.mubr.f32.gmra.mrb[0].mxu0 %v555
        %v726 = vpop.f32.mrb[0].mxu0
        %v727 = vadd.f32 0.0, %v726
        %v728 = vpop.f32.mrb[0].mxu0
        %729 = vmatprep.mubr.f32.mxu0 0.0
        %730 = vmatmul.mubr.f32.gmra.mrb[0].mxu0 %v558
        %v731 = vpop.f32.mrb[0].mxu0
        %v732 = vadd.f32 0.0, %v731
        %v733 = vpop.f32.mrb[0].mxu0
        %734 = vmatprep.mubr.f32.mxu0 0.0
        %735 = vmatmul.mubr.f32.gmra.mrb[0].mxu0 %v561
        %v736 = vpop.f32.mrb[0].mxu0
        %v737 = vadd.f32 0.0, %v736
        %v738 = vpop.f32.mrb[0].mxu0
        %739 = vmatprep.mubr.f32.mxu0 0.0
        %740 = vmatmul.mubr.f32.gmra.mrb[0].mxu0 %v564
        %v741 = vpop.f32.mrb[0].mxu0
        %v742 = vadd.f32 0.0, %v741
        %v743 = vpop.f32.mrb[0].mxu0
        %744 = vmatprep.mubr.f32.mxu0 0.0
        %745 = vmatmul.mubr.f32.gmra.mrb[0].mxu0 %v567
        %v746 = vpop.f32.mrb[0].mxu0
        %v747 = vadd.f32 0.0, %v746
        %v748 = vpop.f32.mrb[0].mxu0
        %749 = vmatprep.mubr.f32.mxu0 0.0
        %750 = vmatmul.mubr.f32.gmra.mrb[0].mxu0 %v570
        %v751 = vpop.f32.mrb[0].mxu0
        %v752 = vadd.f32 0.0, %v751
        %v753 = vpop.f32.mrb[0].mxu0
        %754 = vmatprep.mubr.f32.mxu0 0.0
        %755 = vmatmul.mubr.f32.gmra.mrb[0].mxu0 %v573
        %v756 = vpop.f32.mrb[0].mxu0
        %v757 = vadd.f32 0.0, %v756
        %v758 = vpop.f32.mrb[0].mxu0
        %759 = vmatprep.mubr.f32.mxu0 0.0
        %760 = vmatmul.mubr.f32.gmra.mrb[0].mxu0 %v576
        %v761 = vpop.f32.mrb[0].mxu0
        %v762 = vadd.f32 0.0, %v761
        %v763 = vpop.f32.mrb[0].mxu0
        %764 = vmatprep.mubr.f32.mxu0 0.0
        %765 = vmatmul.mubr.f32.gmra.mrb[0].mxu0 %v579
        %v766 = vpop.f32.mrb[0].mxu0
        %v767 = vadd.f32 0.0, %v766
        %v768 = vpop.f32.mrb[0].mxu0
        %769 = vmatprep.mubr.f32.mxu0 0.0
        %770 = vmatmul.mubr.f32.gmra.mrb[0].mxu0 %v582
        %v771 = vpop.f32.mrb[0].mxu0
        %v772 = vadd.f32 0.0, %v771
        %v773 = vpop.f32.mrb[0].mxu0
        %774 = vmatprep.mubr.f32.mxu0 0.0
        %775 = vmatmul.mubr.f32.gmra.mrb[0].mxu0 %v585
        %v776 = vpop.f32.mrb[0].mxu0
        %v777 = vadd.f32 0.0, %v776
        %v778 = vpop.f32.mrb[0].mxu0
        %779 = vmatprep.mubr.f32.mxu0 0.0
        %780 = vmatmul.mubr.f32.gmra.mrb[0].mxu0 %v588
        %v781 = vpop.f32.mrb[0].mxu0
        %v782 = vadd.f32 0.0, %v781
        %v783 = vpop.f32.mrb[0].mxu0
        %784 = vmatprep.mubr.f32.mxu0 0.0
        %785 = vmatmul.mubr.f32.gmra.mrb[0].mxu0 %v591
        %v786 = vpop.f32.mrb[0].mxu0
        %v787 = vadd.f32 0.0, %v786
        %v788 = vpop.f32.mrb[0].mxu0
        %789 = vmatprep.mubr.f32.mxu0 0.0
        %790 = vmatmul.mubr.f32.gmra.mrb[0].mxu0 %v594
        %v791 = vpop.f32.mrb[0].mxu0
        %v792 = vadd.f32 0.0, %v791
        %v793 = vpop.f32.mrb[0].mxu0
        %794 = vmatprep.mubr.f32.mxu0 0.0
        %795 = vmatmul.mubr.f32.gmra.mrb[0].mxu0 %v597
        %v796 = vpop.f32.mrb[0].mxu0
        %v797 = vadd.f32 0.0, %v796
        %v798 = vpop.f32.mrb[0].mxu0
        %799 = vmatprep.mubr.f32.mxu0 0.0
        %800 = vmatmul.mubr.f32.gmra.mrb[0].mxu0 %v600
        %v801 = vpop.f32.mrb[0].mxu0
        %v802 = vadd.f32 0.0, %v801
        %v803 = vpop.f32.mrb[0].mxu0
        %804 = vmatprep.mubr.f32.mxu0 0.0
        %805 = vmatmul.mubr.f32.gmra.mrb[0].mxu0 %v603
        %v806 = vpop.f32.mrb[0].mxu0
        %v807 = vadd.f32 0.0, %v806
        %v808 = vpop.f32.mrb[0].mxu0
        %809 = vdwg.mxu0
        %vm810 = vcmask 31744
        %v811 = vsel %vm810, %v672, -inf
        %812 = vmax.xlane.f32.xlu0 %v811
        %v813 = vpop.xlane.xlu0 %812
        %v814 = vsel %vm810, %v677, -inf
        %815 = vmax.xlane.f32.xlu0 %v814
        %v816 = vpop.xlane.xlu0 %815
        %v817 = vsel %vm810, %v682, -inf
        %818 = vmax.xlane.f32.xlu0 %v817
        %v819 = vpop.xlane.xlu0 %818
        %v820 = vsel %vm810, %v687, -inf
        %821 = vmax.xlane.f32.xlu0 %v820
        %v822 = vpop.xlane.xlu0 %821
        %v823 = vsel %vm810, %v692, -inf
        %824 = vmax.xlane.f32.xlu0 %v823
        %v825 = vpop.xlane.xlu0 %824
        %v826 = vsel %vm810, %v697, -inf
        %827 = vmax.xlane.f32.xlu0 %v826
        %v828 = vpop.xlane.xlu0 %827
        %v829 = vsel %vm810, %v702, -inf
        %830 = vmax.xlane.f32.xlu0 %v829
        %v831 = vpop.xlane.xlu0 %830
        %v832 = vsel %vm810, %v707, -inf
        %833 = vmax.xlane.f32.xlu0 %v832
        %v834 = vpop.xlane.xlu0 %833
        %v835 = vsel %vm810, %v712, -inf
        %836 = vmax.xlane.f32.xlu0 %v835
        %v837 = vpop.xlane.xlu0 %836
        %v838 = vsel %vm810, %v717, -inf
        %839 = vmax.xlane.f32.xlu0 %v838
        %v840 = vpop.xlane.xlu0 %839
        %v841 = vsel %vm810, %v722, -inf
        %842 = vmax.xlane.f32.xlu0 %v841
        %v843 = vpop.xlane.xlu0 %842
        %v844 = vsel %vm810, %v727, -inf
        %845 = vmax.xlane.f32.xlu0 %v844
        %v846 = vpop.xlane.xlu0 %845
        %v847 = vsel %vm810, %v732, -inf
        %848 = vmax.xlane.f32.xlu0 %v847
        %v849 = vpop.xlane.xlu0 %848
        %v850 = vsel %vm810, %v737, -inf
        %851 = vmax.xlane.f32.xlu0 %v850
        %v852 = vpop.xlane.xlu0 %851
        %v853 = vsel %vm810, %v742, -inf
        %854 = vmax.xlane.f32.xlu0 %v853
        %v855 = vpop.xlane.xlu0 %854
        %v856 = vsel %vm810, %v747, -inf
        %857 = vmax.xlane.f32.xlu0 %v856
        %v858 = vpop.xlane.xlu0 %857
        %v859 = vsel %vm810, %v752, -inf
        %860 = vmax.xlane.f32.xlu0 %v859
        %v861 = vpop.xlane.xlu0 %860
        %v862 = vsel %vm810, %v757, -inf
        %863 = vmax.xlane.f32.xlu0 %v862
        %v864 = vpop.xlane.xlu0 %863
        %v865 = vsel %vm810, %v762, -inf
        %866 = vmax.xlane.f32.xlu0 %v865
        %v867 = vpop.xlane.xlu0 %866
        %v868 = vsel %vm810, %v767, -inf
        %869 = vmax.xlane.f32.xlu0 %v868
        %v870 = vpop.xlane.xlu0 %869
        %v871 = vsel %vm810, %v772, -inf
        %872 = vmax.xlane.f32.xlu0 %v871
        %v873 = vpop.xlane.xlu0 %872
        %v874 = vsel %vm810, %v777, -inf
        %875 = vmax.xlane.f32.xlu0 %v874
        %v876 = vpop.xlane.xlu0 %875
        %v877 = vsel %vm810, %v782, -inf
        %878 = vmax.xlane.f32.xlu0 %v877
        %v879 = vpop.xlane.xlu0 %878
        %v880 = vsel %vm810, %v787, -inf
        %881 = vmax.xlane.f32.xlu0 %v880
        %v882 = vpop.xlane.xlu0 %881
        %v883 = vsel %vm810, %v792, -inf
        %884 = vmax.xlane.f32.xlu0 %v883
        %v885 = vpop.xlane.xlu0 %884
        %v886 = vsel %vm810, %v797, -inf
        %887 = vmax.xlane.f32.xlu0 %v886
        %v888 = vpop.xlane.xlu0 %887
        %v889 = vsel %vm810, %v802, -inf
        %890 = vmax.xlane.f32.xlu0 %v889
        %v891 = vpop.xlane.xlu0 %890
        %v892 = vsel %vm810, %v807, -inf
        %893 = vmax.xlane.f32.xlu0 %v892
        %v894 = vpop.xlane.xlu0 %893
        %v895 = vsub.f32 %v672, %v813
        %v896 = vsub.f32 %v677, %v816
        %v897 = vsub.f32 %v682, %v819
        %v898 = vsub.f32 %v687, %v822
        %v899 = vsub.f32 %v692, %v825
        %v900 = vsub.f32 %v697, %v828
        %v901 = vsub.f32 %v702, %v831
        %v902 = vsub.f32 %v707, %v834
        %v903 = vsub.f32 %v712, %v837
        %v904 = vsub.f32 %v717, %v840
        %v905 = vsub.f32 %v722, %v843
        %v906 = vsub.f32 %v727, %v846
        %v907 = vsub.f32 %v732, %v849
        %v908 = vsub.f32 %v737, %v852
        %v909 = vsub.f32 %v742, %v855
        %v910 = vsub.f32 %v747, %v858
        %v911 = vsub.f32 %v752, %v861
        %v912 = vsub.f32 %v757, %v864
        %v913 = vsub.f32 %v762, %v867
        %v914 = vsub.f32 %v767, %v870
        %v915 = vsub.f32 %v772, %v873
        %v916 = vsub.f32 %v777, %v876
        %v917 = vsub.f32 %v782, %v879
        %v918 = vsub.f32 %v787, %v882
        %v919 = vsub.f32 %v792, %v885
        %v920 = vsub.f32 %v797, %v888
        %v921 = vsub.f32 %v802, %v891
        %v922 = vsub.f32 %v807, %v894
        %v923 = vmul.f32 %v895, 1.442695
        %v924 = vpow.pop %v923
        %v925 = vmul.f32 %v896, 1.442695
        %v926 = vpow.pop %v925
        %v927 = vmul.f32 %v897, 1.442695
        %v928 = vpow.pop %v927
        %v929 = vmul.f32 %v898, 1.442695
        %v930 = vpow.pop %v929
        %v931 = vmul.f32 %v899, 1.442695
        %v932 = vpow.pop %v931
        %v933 = vmul.f32 %v900, 1.442695
        %v934 = vpow.pop %v933
        %v935 = vmul.f32 %v901, 1.442695
        %v936 = vpow.pop %v935
        %v937 = vmul.f32 %v902, 1.442695
        %v938 = vpow.pop %v937
        %v939 = vmul.f32 %v903, 1.442695
        %v940 = vpow.pop %v939
        %v941 = vmul.f32 %v904, 1.442695
        %v942 = vpow.pop %v941
        %v943 = vmul.f32 %v905, 1.442695
        %v944 = vpow.pop %v943
        %v945 = vmul.f32 %v906, 1.442695
        %v946 = vpow.pop %v945
        %v947 = vmul.f32 %v907, 1.442695
        %v948 = vpow.pop %v947
        %v949 = vmul.f32 %v908, 1.442695
        %v950 = vpow.pop %v949
        %v951 = vmul.f32 %v909, 1.442695
        %v952 = vpow.pop %v951
        %v953 = vmul.f32 %v910, 1.442695
        %v954 = vpow.pop %v953
        %v955 = vmul.f32 %v911, 1.442695
        %v956 = vpow.pop %v955
        %v957 = vmul.f32 %v912, 1.442695
        %v958 = vpow.pop %v957
        %v959 = vmul.f32 %v913, 1.442695
        %v960 = vpow.pop %v959
        %v961 = vmul.f32 %v914, 1.442695
        %v962 = vpow.pop %v961
        %v963 = vmul.f32 %v915, 1.442695
        %v964 = vpow.pop %v963
        %v965 = vmul.f32 %v916, 1.442695
        %v966 = vpow.pop %v965
        %v967 = vmul.f32 %v917, 1.442695
        %v968 = vpow.pop %v967
        %v969 = vmul.f32 %v918, 1.442695
        %v970 = vpow.pop %v969
        %v971 = vmul.f32 %v919, 1.442695
        %v972 = vpow.pop %v971
        %v973 = vmul.f32 %v920, 1.442695
        %v974 = vpow.pop %v973
        %v975 = vmul.f32 %v921, 1.442695
        %v976 = vpow.pop %v975
        %v977 = vmul.f32 %v922, 1.442695
        %v978 = vpow.pop %v977
        %v979 = vsel %vm810, %v924, 0.0
        %980 = vadd.xlane.f32.xlu0 %v979
        %v981 = vpop.xlane.xlu0 %980
        %v982 = vsel %vm810, %v926, 0.0
        %983 = vadd.xlane.f32.xlu0 %v982
        %v984 = vpop.xlane.xlu0 %983
        %v985 = vsel %vm810, %v928, 0.0
        %986 = vadd.xlane.f32.xlu0 %v985
        %v987 = vpop.xlane.xlu0 %986
        %v988 = vsel %vm810, %v930, 0.0
        %989 = vadd.xlane.f32.xlu0 %v988
        %v990 = vpop.xlane.xlu0 %989
        %v991 = vsel %vm810, %v932, 0.0
        %992 = vadd.xlane.f32.xlu0 %v991
        %v993 = vpop.xlane.xlu0 %992
        %v994 = vsel %vm810, %v934, 0.0
        %995 = vadd.xlane.f32.xlu0 %v994
        %v996 = vpop.xlane.xlu0 %995
        %v997 = vsel %vm810, %v936, 0.0
        %998 = vadd.xlane.f32.xlu0 %v997
        %v999 = vpop.xlane.xlu0 %998
        %v1000 = vsel %vm810, %v938, 0.0
        %1001 = vadd.xlane.f32.xlu0 %v1000
        %v1002 = vpop.xlane.xlu0 %1001
        %v1003 = vsel %vm810, %v940, 0.0
        %1004 = vadd.xlane.f32.xlu0 %v1003
        %v1005 = vpop.xlane.xlu0 %1004
        %v1006 = vsel %vm810, %v942, 0.0
        %1007 = vadd.xlane.f32.xlu0 %v1006
        %v1008 = vpop.xlane.xlu0 %1007
        %v1009 = vsel %vm810, %v944, 0.0
        %1010 = vadd.xlane.f32.xlu0 %v1009
        %v1011 = vpop.xlane.xlu0 %1010
        %v1012 = vsel %vm810, %v946, 0.0
        %1013 = vadd.xlane.f32.xlu0 %v1012
        %v1014 = vpop.xlane.xlu0 %1013
        %v1015 = vsel %vm810, %v948, 0.0
        %1016 = vadd.xlane.f32.xlu0 %v1015
        %v1017 = vpop.xlane.xlu0 %1016
        %v1018 = vsel %vm810, %v950, 0.0
        %1019 = vadd.xlane.f32.xlu0 %v1018
        %v1020 = vpop.xlane.xlu0 %1019
        %v1021 = vsel %vm810, %v952, 0.0
        %1022 = vadd.xlane.f32.xlu0 %v1021
        %v1023 = vpop.xlane.xlu0 %1022
        %v1024 = vsel %vm810, %v954, 0.0
        %1025 = vadd.xlane.f32.xlu0 %v1024
        %v1026 = vpop.xlane.xlu0 %1025
        %v1027 = vsel %vm810, %v956, 0.0
        %1028 = vadd.xlane.f32.xlu0 %v1027
        %v1029 = vpop.xlane.xlu0 %1028
        %v1030 = vsel %vm810, %v958, 0.0
        %1031 = vadd.xlane.f32.xlu0 %v1030
        %v1032 = vpop.xlane.xlu0 %1031
        %v1033 = vsel %vm810, %v960, 0.0
        %1034 = vadd.xlane.f32.xlu0 %v1033
        %v1035 = vpop.xlane.xlu0 %1034
        %v1036 = vsel %vm810, %v962, 0.0
        %1037 = vadd.xlane.f32.xlu0 %v1036
        %v1038 = vpop.xlane.xlu0 %1037
        %v1039 = vsel %vm810, %v964, 0.0
        %1040 = vadd.xlane.f32.xlu0 %v1039
        %v1041 = vpop.xlane.xlu0 %1040
        %v1042 = vsel %vm810, %v966, 0.0
        %1043 = vadd.xlane.f32.xlu0 %v1042
        %v1044 = vpop.xlane.xlu0 %1043
        %v1045 = vsel %vm810, %v968, 0.0
        %1046 = vadd.xlane.f32.xlu0 %v1045
        %v1047 = vpop.xlane.xlu0 %1046
        %v1048 = vsel %vm810, %v970, 0.0
        %1049 = vadd.xlane.f32.xlu0 %v1048
        %v1050 = vpop.xlane.xlu0 %1049
        %v1051 = vsel %vm810, %v972, 0.0
        %1052 = vadd.xlane.f32.xlu0 %v1051
        %v1053 = vpop.xlane.xlu0 %1052
        %v1054 = vsel %vm810, %v974, 0.0
        %1055 = vadd.xlane.f32.xlu0 %v1054
        %v1056 = vpop.xlane.xlu0 %1055
        %v1057 = vsel %vm810, %v976, 0.0
        %1058 = vadd.xlane.f32.xlu0 %v1057
        %v1059 = vpop.xlane.xlu0 %1058
        %v1060 = vsel %vm810, %v978, 0.0
        %1061 = vadd.xlane.f32.xlu0 %v1060
        %v1062 = vpop.xlane.xlu0 %1061
        %v1063 = vrcp.pop %v981
        %v1064 = vrcp.pop %v984
        %v1065 = vrcp.pop %v987
        %v1066 = vrcp.pop %v990
        %v1067 = vrcp.pop %v993
        %v1068 = vrcp.pop %v996
        %v1069 = vrcp.pop %v999
        %v1070 = vrcp.pop %v1002
        %v1071 = vrcp.pop %v1005
        %v1072 = vrcp.pop %v1008
        %v1073 = vrcp.pop %v1011
        %v1074 = vrcp.pop %v1014
        %v1075 = vrcp.pop %v1017
        %v1076 = vrcp.pop %v1020
        %v1077 = vrcp.pop %v1023
        %v1078 = vrcp.pop %v1026
        %v1079 = vrcp.pop %v1029
        %v1080 = vrcp.pop %v1032
        %v1081 = vrcp.pop %v1035
        %v1082 = vrcp.pop %v1038
        %v1083 = vrcp.pop %v1041
        %v1084 = vrcp.pop %v1044
        %v1085 = vrcp.pop %v1047
        %v1086 = vrcp.pop %v1050
        %v1087 = vrcp.pop %v1053
        %v1088 = vrcp.pop %v1056
        %v1089 = vrcp.pop %v1059
        %v1090 = vrcp.pop %v1062
        %v1091 = vmul.f32 %v924, %v1063
        %v1092 = vmul.f32 %v926, %v1064
        %v1093 = vmul.f32 %v928, %v1065
        %v1094 = vmul.f32 %v930, %v1066
        %v1095 = vmul.f32 %v932, %v1067
        %v1096 = vmul.f32 %v934, %v1068
        %v1097 = vmul.f32 %v936, %v1069
        %v1098 = vmul.f32 %v938, %v1070
        %v1099 = vmul.f32 %v940, %v1071
        %v1100 = vmul.f32 %v942, %v1072
        %v1101 = vmul.f32 %v944, %v1073
        %v1102 = vmul.f32 %v946, %v1074
        %v1103 = vmul.f32 %v948, %v1075
        %v1104 = vmul.f32 %v950, %v1076
        %v1105 = vmul.f32 %v952, %v1077
        %v1106 = vmul.f32 %v954, %v1078
        %v1107 = vmul.f32 %v956, %v1079
        %v1108 = vmul.f32 %v958, %v1080
        %v1109 = vmul.f32 %v960, %v1081
        %v1110 = vmul.f32 %v962, %v1082
        %v1111 = vmul.f32 %v964, %v1083
        %v1112 = vmul.f32 %v966, %v1084
        %v1113 = vmul.f32 %v968, %v1085
        %v1114 = vmul.f32 %v970, %v1086
        %v1115 = vmul.f32 %v972, %v1087
        %v1116 = vmul.f32 %v974, %v1088
        %v1117 = vmul.f32 %v976, %v1089
        %v1118 = vmul.f32 %v978, %v1090
        %1120 = vset.pattern.permute.xlu0 0
        %1121 = vperm.xlu0 %1120, %v1091
        %v1122 = vpop.permute.xlu0 %1121
        %1125 = vset.pattern.permute.xlu0 0
        %1126 = vperm.xlu0 %1125, %v1092
        %v1127 = vpop.permute.xlu0 %1126
        %1130 = vset.pattern.permute.xlu0 0
        %1131 = vperm.xlu0 %1130, %v1093
        %v1132 = vpop.permute.xlu0 %1131
        %1135 = vset.pattern.permute.xlu0 0
        %1136 = vperm.xlu0 %1135, %v1094
        %v1137 = vpop.permute.xlu0 %1136
        %1140 = vset.pattern.permute.xlu0 0
        %1141 = vperm.xlu0 %1140, %v1095
        %v1142 = vpop.permute.xlu0 %1141
        %1145 = vset.pattern.permute.xlu0 0
        %1146 = vperm.xlu0 %1145, %v1096
        %v1147 = vpop.permute.xlu0 %1146
        %1150 = vset.pattern.permute.xlu0 0
        %1151 = vperm.xlu0 %1150, %v1097
        %v1152 = vpop.permute.xlu0 %1151
        %1155 = vset.pattern.permute.xlu0 0
        %1156 = vperm.xlu0 %1155, %v1098
        %v1157 = vpop.permute.xlu0 %1156
        %1160 = vset.pattern.permute.xlu0 0
        %1161 = vperm.xlu0 %1160, %v1099
        %v1162 = vpop.permute.xlu0 %1161
        %1165 = vset.pattern.permute.xlu0 0
        %1166 = vperm.xlu0 %1165, %v1100
        %v1167 = vpop.permute.xlu0 %1166
        %1170 = vset.pattern.permute.xlu0 0
        %1171 = vperm.xlu0 %1170, %v1101
        %v1172 = vpop.permute.xlu0 %1171
        %1175 = vset.pattern.permute.xlu0 0
        %1176 = vperm.xlu0 %1175, %v1102
        %v1177 = vpop.permute.xlu0 %1176
        %1180 = vset.pattern.permute.xlu0 0
        %1181 = vperm.xlu0 %1180, %v1103
        %v1182 = vpop.permute.xlu0 %1181
        %1185 = vset.pattern.permute.xlu0 0
        %1186 = vperm.xlu0 %1185, %v1104
        %v1187 = vpop.permute.xlu0 %1186
        %1190 = vset.pattern.permute.xlu0 0
        %1191 = vperm.xlu0 %1190, %v1105
        %v1192 = vpop.permute.xlu0 %1191
        %1195 = vset.pattern.permute.xlu0 0
        %1196 = vperm.xlu0 %1195, %v1106
        %v1197 = vpop.permute.xlu0 %1196
        %1200 = vset.pattern.permute.xlu0 0
        %1201 = vperm.xlu0 %1200, %v1107
        %v1202 = vpop.permute.xlu0 %1201
        %1205 = vset.pattern.permute.xlu0 0
        %1206 = vperm.xlu0 %1205, %v1108
        %v1207 = vpop.permute.xlu0 %1206
        %1210 = vset.pattern.permute.xlu0 0
        %1211 = vperm.xlu0 %1210, %v1109
        %v1212 = vpop.permute.xlu0 %1211
        %1215 = vset.pattern.permute.xlu0 0
        %1216 = vperm.xlu0 %1215, %v1110
        %v1217 = vpop.permute.xlu0 %1216
        %1220 = vset.pattern.permute.xlu0 0
        %1221 = vperm.xlu0 %1220, %v1111
        %v1222 = vpop.permute.xlu0 %1221
        %1225 = vset.pattern.permute.xlu0 0
        %1226 = vperm.xlu0 %1225, %v1112
        %v1227 = vpop.permute.xlu0 %1226
        %1230 = vset.pattern.permute.xlu0 0
        %1231 = vperm.xlu0 %1230, %v1113
        %v1232 = vpop.permute.xlu0 %1231
        %1235 = vset.pattern.permute.xlu0 0
        %1236 = vperm.xlu0 %1235, %v1114
        %v1237 = vpop.permute.xlu0 %1236
        %1240 = vset.pattern.permute.xlu0 0
        %1241 = vperm.xlu0 %1240, %v1115
        %v1242 = vpop.permute.xlu0 %1241
        %1245 = vset.pattern.permute.xlu0 0
        %1246 = vperm.xlu0 %1245, %v1116
        %v1247 = vpop.permute.xlu0 %1246
        %1250 = vset.pattern.permute.xlu0 0
        %1251 = vperm.xlu0 %1250, %v1117
        %v1252 = vpop.permute.xlu0 %1251
        %1255 = vset.pattern.permute.xlu0 0
        %1256 = vperm.xlu0 %1255, %v1118
        %v1257 = vpop.permute.xlu0 %1256
        %v1259 = vmul.f32 %v228, %v1122
        %v1260 = vmul.f32 %v229, %v1127
        %v1261 = vmul.f32 %v230, %v1132
        %v1262 = vmul.f32 %v231, %v1137
        %v1263 = vmul.f32 %v232, %v1142
        %v1264 = vmul.f32 %v233, %v1147
        %v1265 = vmul.f32 %v234, %v1152
        %v1266 = vmul.f32 %v235, %v1157
        %v1267 = vmul.f32 %v236, %v1162
        %v1268 = vmul.f32 %v237, %v1167
        %v1269 = vmul.f32 %v238, %v1172
        %v1270 = vmul.f32 %v239, %v1177
        %v1271 = vmul.f32 %v240, %v1182
        %v1272 = vmul.f32 %v241, %v1187
        %v1273 = vmul.f32 %v242, %v1192
        %v1274 = vmul.f32 %v243, %v1197
        %v1275 = vmul.f32 %v244, %v1202
        %v1276 = vmul.f32 %v245, %v1207
        %v1277 = vmul.f32 %v246, %v1212
        %v1278 = vmul.f32 %v247, %v1217
        %v1279 = vmul.f32 %v248, %v1222
        %v1280 = vmul.f32 %v249, %v1227
        %v1281 = vmul.f32 %v250, %v1232
        %v1282 = vmul.f32 %v251, %v1237
        %v1283 = vmul.f32 %v252, %v1242
        %v1284 = vmul.f32 %v253, %v1247
        %v1285 = vmul.f32 %v254, %v1252
        %v1286 = vmul.f32 %v255, %v1257
        %1287 = vset.pattern.permute.xlu0 1
        %1288 = vperm.xlu0 %1287, %v1091
        %v1289 = vpop.permute.xlu0 %1288
        %1291 = vset.pattern.permute.xlu0 1
        %1292 = vperm.xlu0 %1291, %v1092
        %v1293 = vpop.permute.xlu0 %1292
        %1295 = vset.pattern.permute.xlu0 1
        %1296 = vperm.xlu0 %1295, %v1093
        %v1297 = vpop.permute.xlu0 %1296
        %1299 = vset.pattern.permute.xlu0 1
        %1300 = vperm.xlu0 %1299, %v1094
        %v1301 = vpop.permute.xlu0 %1300
        %1303 = vset.pattern.permute.xlu0 1
        %1304 = vperm.xlu0 %1303, %v1095
        %v1305 = vpop.permute.xlu0 %1304
        %1307 = vset.pattern.permute.xlu0 1
        %1308 = vperm.xlu0 %1307, %v1096
        %v1309 = vpop.permute.xlu0 %1308
        %1311 = vset.pattern.permute.xlu0 1
        %1312 = vperm.xlu0 %1311, %v1097
        %v1313 = vpop.permute.xlu0 %1312
        %1315 = vset.pattern.permute.xlu0 1
        %1316 = vperm.xlu0 %1315, %v1098
        %v1317 = vpop.permute.xlu0 %1316
        %1319 = vset.pattern.permute.xlu0 1
        %1320 = vperm.xlu0 %1319, %v1099
        %v1321 = vpop.permute.xlu0 %1320
        %1323 = vset.pattern.permute.xlu0 1
        %1324 = vperm.xlu0 %1323, %v1100
        %v1325 = vpop.permute.xlu0 %1324
        %1327 = vset.pattern.permute.xlu0 1
        %1328 = vperm.xlu0 %1327, %v1101
        %v1329 = vpop.permute.xlu0 %1328
        %1331 = vset.pattern.permute.xlu0 1
        %1332 = vperm.xlu0 %1331, %v1102
        %v1333 = vpop.permute.xlu0 %1332
        %1335 = vset.pattern.permute.xlu0 1
        %1336 = vperm.xlu0 %1335, %v1103
        %v1337 = vpop.permute.xlu0 %1336
        %1339 = vset.pattern.permute.xlu0 1
        %1340 = vperm.xlu0 %1339, %v1104
        %v1341 = vpop.permute.xlu0 %1340
        %1343 = vset.pattern.permute.xlu0 1
        %1344 = vperm.xlu0 %1343, %v1105
        %v1345 = vpop.permute.xlu0 %1344
        %1347 = vset.pattern.permute.xlu0 1
        %1348 = vperm.xlu0 %1347, %v1106
        %v1349 = vpop.permute.xlu0 %1348
        %1351 = vset.pattern.permute.xlu0 1
        %1352 = vperm.xlu0 %1351, %v1107
        %v1353 = vpop.permute.xlu0 %1352
        %1355 = vset.pattern.permute.xlu0 1
        %1356 = vperm.xlu0 %1355, %v1108
        %v1357 = vpop.permute.xlu0 %1356
        %1359 = vset.pattern.permute.xlu0 1
        %1360 = vperm.xlu0 %1359, %v1109
        %v1361 = vpop.permute.xlu0 %1360
        %1363 = vset.pattern.permute.xlu0 1
        %1364 = vperm.xlu0 %1363, %v1110
        %v1365 = vpop.permute.xlu0 %1364
        %1367 = vset.pattern.permute.xlu0 1
        %1368 = vperm.xlu0 %1367, %v1111
        %v1369 = vpop.permute.xlu0 %1368
        %1371 = vset.pattern.permute.xlu0 1
        %1372 = vperm.xlu0 %1371, %v1112
        %v1373 = vpop.permute.xlu0 %1372
        %1375 = vset.pattern.permute.xlu0 1
        %1376 = vperm.xlu0 %1375, %v1113
        %v1377 = vpop.permute.xlu0 %1376
        %1379 = vset.pattern.permute.xlu0 1
        %1380 = vperm.xlu0 %1379, %v1114
        %v1381 = vpop.permute.xlu0 %1380
        %1383 = vset.pattern.permute.xlu0 1
        %1384 = vperm.xlu0 %1383, %v1115
        %v1385 = vpop.permute.xlu0 %1384
        %1387 = vset.pattern.permute.xlu0 1
        %1388 = vperm.xlu0 %1387, %v1116
        %v1389 = vpop.permute.xlu0 %1388
        %1391 = vset.pattern.permute.xlu0 1
        %1392 = vperm.xlu0 %1391, %v1117
        %v1393 = vpop.permute.xlu0 %1392
        %1395 = vset.pattern.permute.xlu0 1
        %1396 = vperm.xlu0 %1395, %v1118
        %v1397 = vpop.permute.xlu0 %1396
        %v1399 = vmul.f32 %v228, %v1289
        %v1400 = vmul.f32 %v229, %v1293
        %v1401 = vmul.f32 %v230, %v1297
        %v1402 = vmul.f32 %v231, %v1301
        %v1403 = vmul.f32 %v232, %v1305
        %v1404 = vmul.f32 %v233, %v1309
        %v1405 = vmul.f32 %v234, %v1313
        %v1406 = vmul.f32 %v235, %v1317
        %v1407 = vmul.f32 %v236, %v1321
        %v1408 = vmul.f32 %v237, %v1325
        %v1409 = vmul.f32 %v238, %v1329
        %v1410 = vmul.f32 %v239, %v1333
        %v1411 = vmul.f32 %v240, %v1337
        %v1412 = vmul.f32 %v241, %v1341
        %v1413 = vmul.f32 %v242, %v1345
        %v1414 = vmul.f32 %v243, %v1349
        %v1415 = vmul.f32 %v244, %v1353
        %v1416 = vmul.f32 %v245, %v1357
        %v1417 = vmul.f32 %v246, %v1361
        %v1418 = vmul.f32 %v247, %v1365
        %v1419 = vmul.f32 %v248, %v1369
        %v1420 = vmul.f32 %v249, %v1373
        %v1421 = vmul.f32 %v250, %v1377
        %v1422 = vmul.f32 %v251, %v1381
        %v1423 = vmul.f32 %v252, %v1385
        %v1424 = vmul.f32 %v253, %v1389
        %v1425 = vmul.f32 %v254, %v1393
        %v1426 = vmul.f32 %v255, %v1397
        %1455 = vrot.lane.b32.xlu0 %v1399, 96
        %v1456 = vpop.permute.xlu0 %1455
        %1457 = vrot.lane.b32.xlu0 %v1400, 96
        %v1458 = vpop.permute.xlu0 %1457
        %1459 = vrot.lane.b32.xlu0 %v1401, 96
        %v1460 = vpop.permute.xlu0 %1459
        %1461 = vrot.lane.b32.xlu0 %v1402, 96
        %v1462 = vpop.permute.xlu0 %1461
        %1463 = vrot.lane.b32.xlu0 %v1403, 96
        %v1464 = vpop.permute.xlu0 %1463
        %1465 = vrot.lane.b32.xlu0 %v1404, 96
        %v1466 = vpop.permute.xlu0 %1465
        %1467 = vrot.lane.b32.xlu0 %v1405, 96
        %v1468 = vpop.permute.xlu0 %1467
        %1469 = vrot.lane.b32.xlu0 %v1406, 96
        %v1470 = vpop.permute.xlu0 %1469
        %1471 = vrot.lane.b32.xlu0 %v1407, 96
        %v1472 = vpop.permute.xlu0 %1471
        %1473 = vrot.lane.b32.xlu0 %v1408, 96
        %v1474 = vpop.permute.xlu0 %1473
        %1475 = vrot.lane.b32.xlu0 %v1409, 96
        %v1476 = vpop.permute.xlu0 %1475
        %1477 = vrot.lane.b32.xlu0 %v1410, 96
        %v1478 = vpop.permute.xlu0 %1477
        %1479 = vrot.lane.b32.xlu0 %v1411, 96
        %v1480 = vpop.permute.xlu0 %1479
        %1481 = vrot.lane.b32.xlu0 %v1412, 96
        %v1482 = vpop.permute.xlu0 %1481
        %1483 = vrot.lane.b32.xlu0 %v1413, 96
        %v1484 = vpop.permute.xlu0 %1483
        %1485 = vrot.lane.b32.xlu0 %v1414, 96
        %v1486 = vpop.permute.xlu0 %1485
        %1487 = vrot.lane.b32.xlu0 %v1415, 96
        %v1488 = vpop.permute.xlu0 %1487
        %1489 = vrot.lane.b32.xlu0 %v1416, 96
        %v1490 = vpop.permute.xlu0 %1489
        %1491 = vrot.lane.b32.xlu0 %v1417, 96
        %v1492 = vpop.permute.xlu0 %1491
        %1493 = vrot.lane.b32.xlu0 %v1418, 96
        %v1494 = vpop.permute.xlu0 %1493
        %1495 = vrot.lane.b32.xlu0 %v1419, 96
        %v1496 = vpop.permute.xlu0 %1495
        %1497 = vrot.lane.b32.xlu0 %v1420, 96
        %v1498 = vpop.permute.xlu0 %1497
        %1499 = vrot.lane.b32.xlu0 %v1421, 96
        %v1500 = vpop.permute.xlu0 %1499
        %1501 = vrot.lane.b32.xlu0 %v1422, 96
        %v1502 = vpop.permute.xlu0 %1501
        %1503 = vrot.lane.b32.xlu0 %v1423, 96
        %v1504 = vpop.permute.xlu0 %1503
        %1505 = vrot.lane.b32.xlu0 %v1424, 96
        %v1506 = vpop.permute.xlu0 %1505
        %1507 = vrot.lane.b32.xlu0 %v1425, 96
        %v1508 = vpop.permute.xlu0 %1507
        %1509 = vrot.lane.b32.xlu0 %v1426, 96
        %v1510 = vpop.permute.xlu0 %1509
        %v1539 = vadd.f32 %v1259, %v1456
        %v1540 = vadd.f32 %v1260, %v1458
        %v1541 = vadd.f32 %v1261, %v1460
        %v1542 = vadd.f32 %v1262, %v1462
        %v1543 = vadd.f32 %v1263, %v1464
        %v1544 = vadd.f32 %v1264, %v1466
        %v1545 = vadd.f32 %v1265, %v1468
        %v1546 = vadd.f32 %v1266, %v1470
        %v1547 = vadd.f32 %v1267, %v1472
        %v1548 = vadd.f32 %v1268, %v1474
        %v1549 = vadd.f32 %v1269, %v1476
        %v1550 = vadd.f32 %v1270, %v1478
        %v1551 = vadd.f32 %v1271, %v1480
        %v1552 = vadd.f32 %v1272, %v1482
        %v1553 = vadd.f32 %v1273, %v1484
        %v1554 = vadd.f32 %v1274, %v1486
        %v1555 = vadd.f32 %v1275, %v1488
        %v1556 = vadd.f32 %v1276, %v1490
        %v1557 = vadd.f32 %v1277, %v1492
        %v1558 = vadd.f32 %v1278, %v1494
        %v1559 = vadd.f32 %v1279, %v1496
        %v1560 = vadd.f32 %v1280, %v1498
        %v1561 = vadd.f32 %v1281, %v1500
        %v1562 = vadd.f32 %v1282, %v1502
        %v1563 = vadd.f32 %v1283, %v1504
        %v1564 = vadd.f32 %v1284, %v1506
        %v1565 = vadd.f32 %v1285, %v1508
        %v1566 = vadd.f32 %v1286, %v1510
        %1567 = vset.pattern.permute.xlu0 2
        %1568 = vperm.xlu0 %1567, %v1091
        %v1569 = vpop.permute.xlu0 %1568
        %1571 = vset.pattern.permute.xlu0 2
        %1572 = vperm.xlu0 %1571, %v1092
        %v1573 = vpop.permute.xlu0 %1572
        %1575 = vset.pattern.permute.xlu0 2
        %1576 = vperm.xlu0 %1575, %v1093
        %v1577 = vpop.permute.xlu0 %1576
        %1579 = vset.pattern.permute.xlu0 2
        %1580 = vperm.xlu0 %1579, %v1094
        %v1581 = vpop.permute.xlu0 %1580
        %1583 = vset.pattern.permute.xlu0 2
        %1584 = vperm.xlu0 %1583, %v1095
        %v1585 = vpop.permute.xlu0 %1584
        %1587 = vset.pattern.permute.xlu0 2
        %1588 = vperm.xlu0 %1587, %v1096
        %v1589 = vpop.permute.xlu0 %1588
        %1591 = vset.pattern.permute.xlu0 2
        %1592 = vperm.xlu0 %1591, %v1097
        %v1593 = vpop.permute.xlu0 %1592
        %1595 = vset.pattern.permute.xlu0 2
        %1596 = vperm.xlu0 %1595, %v1098
        %v1597 = vpop.permute.xlu0 %1596
        %1599 = vset.pattern.permute.xlu0 2
        %1600 = vperm.xlu0 %1599, %v1099
        %v1601 = vpop.permute.xlu0 %1600
        %1603 = vset.pattern.permute.xlu0 2
        %1604 = vperm.xlu0 %1603, %v1100
        %v1605 = vpop.permute.xlu0 %1604
        %1607 = vset.pattern.permute.xlu0 2
        %1608 = vperm.xlu0 %1607, %v1101
        %v1609 = vpop.permute.xlu0 %1608
        %1611 = vset.pattern.permute.xlu0 2
        %1612 = vperm.xlu0 %1611, %v1102
        %v1613 = vpop.permute.xlu0 %1612
        %1615 = vset.pattern.permute.xlu0 2
        %1616 = vperm.xlu0 %1615, %v1103
        %v1617 = vpop.permute.xlu0 %1616
        %1619 = vset.pattern.permute.xlu0 2
        %1620 = vperm.xlu0 %1619, %v1104
        %v1621 = vpop.permute.xlu0 %1620
        %1623 = vset.pattern.permute.xlu0 2
        %1624 = vperm.xlu0 %1623, %v1105
        %v1625 = vpop.permute.xlu0 %1624
        %1627 = vset.pattern.permute.xlu0 2
        %1628 = vperm.xlu0 %1627, %v1106
        %v1629 = vpop.permute.xlu0 %1628
        %1631 = vset.pattern.permute.xlu0 2
        %1632 = vperm.xlu0 %1631, %v1107
        %v1633 = vpop.permute.xlu0 %1632
        %1635 = vset.pattern.permute.xlu0 2
        %1636 = vperm.xlu0 %1635, %v1108
        %v1637 = vpop.permute.xlu0 %1636
        %1639 = vset.pattern.permute.xlu0 2
        %1640 = vperm.xlu0 %1639, %v1109
        %v1641 = vpop.permute.xlu0 %1640
        %1643 = vset.pattern.permute.xlu0 2
        %1644 = vperm.xlu0 %1643, %v1110
        %v1645 = vpop.permute.xlu0 %1644
        %1647 = vset.pattern.permute.xlu0 2
        %1648 = vperm.xlu0 %1647, %v1111
        %v1649 = vpop.permute.xlu0 %1648
        %1651 = vset.pattern.permute.xlu0 2
        %1652 = vperm.xlu0 %1651, %v1112
        %v1653 = vpop.permute.xlu0 %1652
        %1655 = vset.pattern.permute.xlu0 2
        %1656 = vperm.xlu0 %1655, %v1113
        %v1657 = vpop.permute.xlu0 %1656
        %1659 = vset.pattern.permute.xlu0 2
        %1660 = vperm.xlu0 %1659, %v1114
        %v1661 = vpop.permute.xlu0 %1660
        %1663 = vset.pattern.permute.xlu0 2
        %1664 = vperm.xlu0 %1663, %v1115
        %v1665 = vpop.permute.xlu0 %1664
        %1667 = vset.pattern.permute.xlu0 2
        %1668 = vperm.xlu0 %1667, %v1116
        %v1669 = vpop.permute.xlu0 %1668
        %1671 = vset.pattern.permute.xlu0 2
        %1672 = vperm.xlu0 %1671, %v1117
        %v1673 = vpop.permute.xlu0 %1672
        %1675 = vset.pattern.permute.xlu0 2
        %1676 = vperm.xlu0 %1675, %v1118
        %v1677 = vpop.permute.xlu0 %1676
        %v1679 = vmul.f32 %v228, %v1569
        %v1680 = vmul.f32 %v229, %v1573
        %v1681 = vmul.f32 %v230, %v1577
        %v1682 = vmul.f32 %v231, %v1581
        %v1683 = vmul.f32 %v232, %v1585
        %v1684 = vmul.f32 %v233, %v1589
        %v1685 = vmul.f32 %v234, %v1593
        %v1686 = vmul.f32 %v235, %v1597
        %v1687 = vmul.f32 %v236, %v1601
        %v1688 = vmul.f32 %v237, %v1605
        %v1689 = vmul.f32 %v238, %v1609
        %v1690 = vmul.f32 %v239, %v1613
        %v1691 = vmul.f32 %v240, %v1617
        %v1692 = vmul.f32 %v241, %v1621
        %v1693 = vmul.f32 %v242, %v1625
        %v1694 = vmul.f32 %v243, %v1629
        %v1695 = vmul.f32 %v244, %v1633
        %v1696 = vmul.f32 %v245, %v1637
        %v1697 = vmul.f32 %v246, %v1641
        %v1698 = vmul.f32 %v247, %v1645
        %v1699 = vmul.f32 %v248, %v1649
        %v1700 = vmul.f32 %v249, %v1653
        %v1701 = vmul.f32 %v250, %v1657
        %v1702 = vmul.f32 %v251, %v1661
        %v1703 = vmul.f32 %v252, %v1665
        %v1704 = vmul.f32 %v253, %v1669
        %v1705 = vmul.f32 %v254, %v1673
        %v1706 = vmul.f32 %v255, %v1677
        %1735 = vrot.lane.b32.xlu0 %v1679, 64
        %v1736 = vpop.permute.xlu0 %1735
        %1737 = vrot.lane.b32.xlu0 %v1680, 64
        %v1738 = vpop.permute.xlu0 %1737
        %1739 = vrot.lane.b32.xlu0 %v1681, 64
        %v1740 = vpop.permute.xlu0 %1739
        %1741 = vrot.lane.b32.xlu0 %v1682, 64
        %v1742 = vpop.permute.xlu0 %1741
        %1743 = vrot.lane.b32.xlu0 %v1683, 64
        %v1744 = vpop.permute.xlu0 %1743
        %1745 = vrot.lane.b32.xlu0 %v1684, 64
        %v1746 = vpop.permute.xlu0 %1745
        %1747 = vrot.lane.b32.xlu0 %v1685, 64
        %v1748 = vpop.permute.xlu0 %1747
        %1749 = vrot.lane.b32.xlu0 %v1686, 64
        %v1750 = vpop.permute.xlu0 %1749
        %1751 = vrot.lane.b32.xlu0 %v1687, 64
        %v1752 = vpop.permute.xlu0 %1751
        %1753 = vrot.lane.b32.xlu0 %v1688, 64
        %v1754 = vpop.permute.xlu0 %1753
        %1755 = vrot.lane.b32.xlu0 %v1689, 64
        %v1756 = vpop.permute.xlu0 %1755
        %1757 = vrot.lane.b32.xlu0 %v1690, 64
        %v1758 = vpop.permute.xlu0 %1757
        %1759 = vrot.lane.b32.xlu0 %v1691, 64
        %v1760 = vpop.permute.xlu0 %1759
        %1761 = vrot.lane.b32.xlu0 %v1692, 64
        %v1762 = vpop.permute.xlu0 %1761
        %1763 = vrot.lane.b32.xlu0 %v1693, 64
        %v1764 = vpop.permute.xlu0 %1763
        %1765 = vrot.lane.b32.xlu0 %v1694, 64
        %v1766 = vpop.permute.xlu0 %1765
        %1767 = vrot.lane.b32.xlu0 %v1695, 64
        %v1768 = vpop.permute.xlu0 %1767
        %1769 = vrot.lane.b32.xlu0 %v1696, 64
        %v1770 = vpop.permute.xlu0 %1769
        %1771 = vrot.lane.b32.xlu0 %v1697, 64
        %v1772 = vpop.permute.xlu0 %1771
        %1773 = vrot.lane.b32.xlu0 %v1698, 64
        %v1774 = vpop.permute.xlu0 %1773
        %1775 = vrot.lane.b32.xlu0 %v1699, 64
        %v1776 = vpop.permute.xlu0 %1775
        %1777 = vrot.lane.b32.xlu0 %v1700, 64
        %v1778 = vpop.permute.xlu0 %1777
        %1779 = vrot.lane.b32.xlu0 %v1701, 64
        %v1780 = vpop.permute.xlu0 %1779
        %1781 = vrot.lane.b32.xlu0 %v1702, 64
        %v1782 = vpop.permute.xlu0 %1781
        %1783 = vrot.lane.b32.xlu0 %v1703, 64
        %v1784 = vpop.permute.xlu0 %1783
        %1785 = vrot.lane.b32.xlu0 %v1704, 64
        %v1786 = vpop.permute.xlu0 %1785
        %1787 = vrot.lane.b32.xlu0 %v1705, 64
        %v1788 = vpop.permute.xlu0 %1787
        %1789 = vrot.lane.b32.xlu0 %v1706, 64
        %v1790 = vpop.permute.xlu0 %1789
        %v1819 = vadd.f32 %v1539, %v1736
        %v1820 = vadd.f32 %v1540, %v1738
        %v1821 = vadd.f32 %v1541, %v1740
        %v1822 = vadd.f32 %v1542, %v1742
        %v1823 = vadd.f32 %v1543, %v1744
        %v1824 = vadd.f32 %v1544, %v1746
        %v1825 = vadd.f32 %v1545, %v1748
        %v1826 = vadd.f32 %v1546, %v1750
        %v1827 = vadd.f32 %v1547, %v1752
        %v1828 = vadd.f32 %v1548, %v1754
        %v1829 = vadd.f32 %v1549, %v1756
        %v1830 = vadd.f32 %v1550, %v1758
        %v1831 = vadd.f32 %v1551, %v1760
        %v1832 = vadd.f32 %v1552, %v1762
        %v1833 = vadd.f32 %v1553, %v1764
        %v1834 = vadd.f32 %v1554, %v1766
        %v1835 = vadd.f32 %v1555, %v1768
        %v1836 = vadd.f32 %v1556, %v1770
        %v1837 = vadd.f32 %v1557, %v1772
        %v1838 = vadd.f32 %v1558, %v1774
        %v1839 = vadd.f32 %v1559, %v1776
        %v1840 = vadd.f32 %v1560, %v1778
        %v1841 = vadd.f32 %v1561, %v1780
        %v1842 = vadd.f32 %v1562, %v1782
        %v1843 = vadd.f32 %v1563, %v1784
        %v1844 = vadd.f32 %v1564, %v1786
        %v1845 = vadd.f32 %v1565, %v1788
        %v1846 = vadd.f32 %v1566, %v1790
        %1847 = vset.pattern.permute.xlu0 3
        %1848 = vperm.xlu0 %1847, %v1091
        %v1849 = vpop.permute.xlu0 %1848
        %1851 = vset.pattern.permute.xlu0 3
        %1852 = vperm.xlu0 %1851, %v1092
        %v1853 = vpop.permute.xlu0 %1852
        %1855 = vset.pattern.permute.xlu0 3
        %1856 = vperm.xlu0 %1855, %v1093
        %v1857 = vpop.permute.xlu0 %1856
        %1859 = vset.pattern.permute.xlu0 3
        %1860 = vperm.xlu0 %1859, %v1094
        %v1861 = vpop.permute.xlu0 %1860
        %1863 = vset.pattern.permute.xlu0 3
        %1864 = vperm.xlu0 %1863, %v1095
        %v1865 = vpop.permute.xlu0 %1864
        %1867 = vset.pattern.permute.xlu0 3
        %1868 = vperm.xlu0 %1867, %v1096
        %v1869 = vpop.permute.xlu0 %1868
        %1871 = vset.pattern.permute.xlu0 3
        %1872 = vperm.xlu0 %1871, %v1097
        %v1873 = vpop.permute.xlu0 %1872
        %1875 = vset.pattern.permute.xlu0 3
        %1876 = vperm.xlu0 %1875, %v1098
        %v1877 = vpop.permute.xlu0 %1876
        %1879 = vset.pattern.permute.xlu0 3
        %1880 = vperm.xlu0 %1879, %v1099
        %v1881 = vpop.permute.xlu0 %1880
        %1883 = vset.pattern.permute.xlu0 3
        %1884 = vperm.xlu0 %1883, %v1100
        %v1885 = vpop.permute.xlu0 %1884
        %1887 = vset.pattern.permute.xlu0 3
        %1888 = vperm.xlu0 %1887, %v1101
        %v1889 = vpop.permute.xlu0 %1888
        %1891 = vset.pattern.permute.xlu0 3
        %1892 = vperm.xlu0 %1891, %v1102
        %v1893 = vpop.permute.xlu0 %1892
        %1895 = vset.pattern.permute.xlu0 3
        %1896 = vperm.xlu0 %1895, %v1103
        %v1897 = vpop.permute.xlu0 %1896
        %1899 = vset.pattern.permute.xlu0 3
        %1900 = vperm.xlu0 %1899, %v1104
        %v1901 = vpop.permute.xlu0 %1900
        %1903 = vset.pattern.permute.xlu0 3
        %1904 = vperm.xlu0 %1903, %v1105
        %v1905 = vpop.permute.xlu0 %1904
        %1907 = vset.pattern.permute.xlu0 3
        %1908 = vperm.xlu0 %1907, %v1106
        %v1909 = vpop.permute.xlu0 %1908
        %1911 = vset.pattern.permute.xlu0 3
        %1912 = vperm.xlu0 %1911, %v1107
        %v1913 = vpop.permute.xlu0 %1912
        %1915 = vset.pattern.permute.xlu0 3
        %1916 = vperm.xlu0 %1915, %v1108
        %v1917 = vpop.permute.xlu0 %1916
        %1919 = vset.pattern.permute.xlu0 3
        %1920 = vperm.xlu0 %1919, %v1109
        %v1921 = vpop.permute.xlu0 %1920
        %1923 = vset.pattern.permute.xlu0 3
        %1924 = vperm.xlu0 %1923, %v1110
        %v1925 = vpop.permute.xlu0 %1924
        %1927 = vset.pattern.permute.xlu0 3
        %1928 = vperm.xlu0 %1927, %v1111
        %v1929 = vpop.permute.xlu0 %1928
        %1931 = vset.pattern.permute.xlu0 3
        %1932 = vperm.xlu0 %1931, %v1112
        %v1933 = vpop.permute.xlu0 %1932
        %1935 = vset.pattern.permute.xlu0 3
        %1936 = vperm.xlu0 %1935, %v1113
        %v1937 = vpop.permute.xlu0 %1936
        %1939 = vset.pattern.permute.xlu0 3
        %1940 = vperm.xlu0 %1939, %v1114
        %v1941 = vpop.permute.xlu0 %1940
        %1943 = vset.pattern.permute.xlu0 3
        %1944 = vperm.xlu0 %1943, %v1115
        %v1945 = vpop.permute.xlu0 %1944
        %1947 = vset.pattern.permute.xlu0 3
        %1948 = vperm.xlu0 %1947, %v1116
        %v1949 = vpop.permute.xlu0 %1948
        %1951 = vset.pattern.permute.xlu0 3
        %1952 = vperm.xlu0 %1951, %v1117
        %v1953 = vpop.permute.xlu0 %1952
        %1955 = vset.pattern.permute.xlu0 3
        %1956 = vperm.xlu0 %1955, %v1118
        %v1957 = vpop.permute.xlu0 %1956
        %v1959 = vmul.f32 %v228, %v1849
        %v1960 = vmul.f32 %v229, %v1853
        %v1961 = vmul.f32 %v230, %v1857
        %v1962 = vmul.f32 %v231, %v1861
        %v1963 = vmul.f32 %v232, %v1865
        %v1964 = vmul.f32 %v233, %v1869
        %v1965 = vmul.f32 %v234, %v1873
        %v1966 = vmul.f32 %v235, %v1877
        %v1967 = vmul.f32 %v236, %v1881
        %v1968 = vmul.f32 %v237, %v1885
        %v1969 = vmul.f32 %v238, %v1889
        %v1970 = vmul.f32 %v239, %v1893
        %v1971 = vmul.f32 %v240, %v1897
        %v1972 = vmul.f32 %v241, %v1901
        %v1973 = vmul.f32 %v242, %v1905
        %v1974 = vmul.f32 %v243, %v1909
        %v1975 = vmul.f32 %v244, %v1913
        %v1976 = vmul.f32 %v245, %v1917
        %v1977 = vmul.f32 %v246, %v1921
        %v1978 = vmul.f32 %v247, %v1925
        %v1979 = vmul.f32 %v248, %v1929
        %v1980 = vmul.f32 %v249, %v1933
        %v1981 = vmul.f32 %v250, %v1937
        %v1982 = vmul.f32 %v251, %v1941
        %v1983 = vmul.f32 %v252, %v1945
        %v1984 = vmul.f32 %v253, %v1949
        %v1985 = vmul.f32 %v254, %v1953
        %v1986 = vmul.f32 %v255, %v1957
        %2015 = vrot.lane.b32.xlu0 %v1959, 32
        %v2016 = vpop.permute.xlu0 %2015
        %2017 = vrot.lane.b32.xlu0 %v1960, 32
        %v2018 = vpop.permute.xlu0 %2017
        %2019 = vrot.lane.b32.xlu0 %v1961, 32
        %v2020 = vpop.permute.xlu0 %2019
        %2021 = vrot.lane.b32.xlu0 %v1962, 32
        %v2022 = vpop.permute.xlu0 %2021
        %2023 = vrot.lane.b32.xlu0 %v1963, 32
        %v2024 = vpop.permute.xlu0 %2023
        %2025 = vrot.lane.b32.xlu0 %v1964, 32
        %v2026 = vpop.permute.xlu0 %2025
        %2027 = vrot.lane.b32.xlu0 %v1965, 32
        %v2028 = vpop.permute.xlu0 %2027
        %2029 = vrot.lane.b32.xlu0 %v1966, 32
        %v2030 = vpop.permute.xlu0 %2029
        %2031 = vrot.lane.b32.xlu0 %v1967, 32
        %v2032 = vpop.permute.xlu0 %2031
        %2033 = vrot.lane.b32.xlu0 %v1968, 32
        %v2034 = vpop.permute.xlu0 %2033
        %2035 = vrot.lane.b32.xlu0 %v1969, 32
        %v2036 = vpop.permute.xlu0 %2035
        %2037 = vrot.lane.b32.xlu0 %v1970, 32
        %v2038 = vpop.permute.xlu0 %2037
        %2039 = vrot.lane.b32.xlu0 %v1971, 32
        %v2040 = vpop.permute.xlu0 %2039
        %2041 = vrot.lane.b32.xlu0 %v1972, 32
        %v2042 = vpop.permute.xlu0 %2041
        %2043 = vrot.lane.b32.xlu0 %v1973, 32
        %v2044 = vpop.permute.xlu0 %2043
        %2045 = vrot.lane.b32.xlu0 %v1974, 32
        %v2046 = vpop.permute.xlu0 %2045
        %2047 = vrot.lane.b32.xlu0 %v1975, 32
        %v2048 = vpop.permute.xlu0 %2047
        %2049 = vrot.lane.b32.xlu0 %v1976, 32
        %v2050 = vpop.permute.xlu0 %2049
        %2051 = vrot.lane.b32.xlu0 %v1977, 32
        %v2052 = vpop.permute.xlu0 %2051
        %2053 = vrot.lane.b32.xlu0 %v1978, 32
        %v2054 = vpop.permute.xlu0 %2053
        %2055 = vrot.lane.b32.xlu0 %v1979, 32
        %v2056 = vpop.permute.xlu0 %2055
        %2057 = vrot.lane.b32.xlu0 %v1980, 32
        %v2058 = vpop.permute.xlu0 %2057
        %2059 = vrot.lane.b32.xlu0 %v1981, 32
        %v2060 = vpop.permute.xlu0 %2059
        %2061 = vrot.lane.b32.xlu0 %v1982, 32
        %v2062 = vpop.permute.xlu0 %2061
        %2063 = vrot.lane.b32.xlu0 %v1983, 32
        %v2064 = vpop.permute.xlu0 %2063
        %2065 = vrot.lane.b32.xlu0 %v1984, 32
        %v2066 = vpop.permute.xlu0 %2065
        %2067 = vrot.lane.b32.xlu0 %v1985, 32
        %v2068 = vpop.permute.xlu0 %2067
        %2069 = vrot.lane.b32.xlu0 %v1986, 32
        %v2070 = vpop.permute.xlu0 %2069
        %v2099 = vadd.f32 %v1819, %v2016
        %v2100 = vadd.f32 %v1820, %v2018
        %v2101 = vadd.f32 %v1821, %v2020
        %v2102 = vadd.f32 %v1822, %v2022
        %v2103 = vadd.f32 %v1823, %v2024
        %v2104 = vadd.f32 %v1824, %v2026
        %v2105 = vadd.f32 %v1825, %v2028
        %v2106 = vadd.f32 %v1826, %v2030
        %v2107 = vadd.f32 %v1827, %v2032
        %v2108 = vadd.f32 %v1828, %v2034
        %v2109 = vadd.f32 %v1829, %v2036
        %v2110 = vadd.f32 %v1830, %v2038
        %v2111 = vadd.f32 %v1831, %v2040
        %v2112 = vadd.f32 %v1832, %v2042
        %v2113 = vadd.f32 %v1833, %v2044
        %v2114 = vadd.f32 %v1834, %v2046
        %v2115 = vadd.f32 %v1835, %v2048
        %v2116 = vadd.f32 %v1836, %v2050
        %v2117 = vadd.f32 %v1837, %v2052
        %v2118 = vadd.f32 %v1838, %v2054
        %v2119 = vadd.f32 %v1839, %v2056
        %v2120 = vadd.f32 %v1840, %v2058
        %v2121 = vadd.f32 %v1841, %v2060
        %v2122 = vadd.f32 %v1842, %v2062
        %v2123 = vadd.f32 %v1843, %v2064
        %v2124 = vadd.f32 %v1844, %v2066
        %v2125 = vadd.f32 %v1845, %v2068
        %v2126 = vadd.f32 %v1846, %v2070
        %vm2127 = vcmask 261120
        %2128 = vst.msk [vmem:[%s217] sm:$0xff] %vm2127, %v2099
        %2129 = vst.msk [vmem:[%s217 + $0x8] sm:$0xff] %vm2127, %v2100
        %2130 = vst.msk [vmem:[%s217 + $0x10] sm:$0xff] %vm2127, %v2101
        %2131 = vst.msk [vmem:[%s217 + $0x18] sm:$0xff] %vm2127, %v2102
        %2132 = vst.msk [vmem:[%s217 + $0x20] sm:$0xff] %vm2127, %v2103
        %2133 = vst.msk [vmem:[%s217 + $0x28] sm:$0xff] %vm2127, %v2104
        %2134 = vst.msk [vmem:[%s217 + $0x30] sm:$0xff] %vm2127, %v2105
        %2135 = vst.msk [vmem:[%s217 + $0x38] sm:$0xff] %vm2127, %v2106
        %2136 = vst.msk [vmem:[%s217 + $0x40] sm:$0xff] %vm2127, %v2107
        %2137 = vst.msk [vmem:[%s217 + $0x48] sm:$0xff] %vm2127, %v2108
        %2138 = vst.msk [vmem:[%s217 + $0x50] sm:$0xff] %vm2127, %v2109
        %2139 = vst.msk [vmem:[%s217 + $0x58] sm:$0xff] %vm2127, %v2110
        %2140 = vst.msk [vmem:[%s217 + $0x60] sm:$0xff] %vm2127, %v2111
        %2141 = vst.msk [vmem:[%s217 + $0x68] sm:$0xff] %vm2127, %v2112
        %2142 = vst.msk [vmem:[%s217 + $0x70] sm:$0xff] %vm2127, %v2113
        %2143 = vst.msk [vmem:[%s217 + $0x78] sm:$0xff] %vm2127, %v2114
        %2144 = vst.msk [vmem:[%s217 + $0x80] sm:$0xff] %vm2127, %v2115
        %2145 = vst.msk [vmem:[%s217 + $0x88] sm:$0xff] %vm2127, %v2116
        %2146 = vst.msk [vmem:[%s217 + $0x90] sm:$0xff] %vm2127, %v2117
        %2147 = vst.msk [vmem:[%s217 + $0x98] sm:$0xff] %vm2127, %v2118
        %2148 = vst.msk [vmem:[%s217 + $0xa0] sm:$0xff] %vm2127, %v2119
        %2149 = vst.msk [vmem:[%s217 + $0xa8] sm:$0xff] %vm2127, %v2120
        %2150 = vst.msk [vmem:[%s217 + $0xb0] sm:$0xff] %vm2127, %v2121
        %2151 = vst.msk [vmem:[%s217 + $0xb8] sm:$0xff] %vm2127, %v2122
        %2152 = vst.msk [vmem:[%s217 + $0xc0] sm:$0xff] %vm2127, %v2123
        %2153 = vst.msk [vmem:[%s217 + $0xc8] sm:$0xff] %vm2127, %v2124
        %2154 = vst.msk [vmem:[%s217 + $0xd0] sm:$0xff] %vm2127, %v2125
        %2155 = vst.msk [vmem:[%s217 + $0xd8] sm:$0xff] %vm2127, %v2126
        %s2156 = sand.u32 %s115, 1
        %s2157 = sand.u32 %s115, 1
        %s2158 = smul.addr %s2157, 224
        %s2159 = scalar_lea.vmem [#allocation4], %s2158
        // Predicated region
        $region41: #{tpu_custom_call.1} parent=35 // pred_check
          %p2160 = pneg %p125
        $region42: #{tpu_custom_call.1} parent=35 // pred_check_branch
          %2162 = sbr.rel (%p2160) target = $region44
        $region43: #{tpu_custom_call.1} parent=35 // pred_region
          %s2163 = smul.u32 28, %s18
          %s2164 = ssub.s32 125, %s2163
          %p2165 = scmp.lt.s32.totalorder %s2164, 28
          %s2166 = scalar_select %p2165, %s2164, 28
          %s2167 = smul.u32 128, %s2166
          %p2168 = scmp.ne.s32.totalorder 0, %s2167
          %s2169 = smul.addr %s2163, 8
          %s2170 = scalar_lea.vmem %s4, %s2169
          // Predicated region
          $region45: #{tpu_custom_call.1} parent=43 // pred_check
            %p2171 = pneg %p2168
          $region46: #{tpu_custom_call.1} parent=43 // pred_check_branch
            %2173 = sbr.rel (%p2171) target = $region48
          $region47: #{tpu_custom_call.1} parent=43 // pred_region
            // Predicated region
            $region49: #{tpu_custom_call.1} parent=47 // pred_check
              _
            $region50: #{tpu_custom_call.1} parent=47 // pred_check_branch
              %2175 = sbr.rel (0) target = $region52
            $region51: #{tpu_custom_call.1} parent=47 // pred_region
              // Predicated region
              $region71: #{tpu_custom_call.1} parent=51 // pred_check
                _
              $region72: #{tpu_custom_call.1} parent=51 // pred_check_branch
                %2279 = sbr.rel (0) target = $region74
              $region73: #{tpu_custom_call.1} parent=51 // pred_region
                %s2280 = sdiv.u32.pop %s2166, 28
                %s2281 = srem.u32.pop %s2166, 28
                // While loop
                $region75: #{tpu_custom_call.1} parent=73 // loop_pre_header
                  _
                $region76: #{tpu_custom_call.1} parent=73 // loop_header
                  %s2283 = sphi 0, %s2285
                  %p2284 = scmp.ge.s32.totalorder %s2283, %s2280
                  %s2288 = sphi 0, %s2349
                  %s2289 = sphi %s2159, %s2352
                  %s2290 = sphi %s2170, %s2353
                $region77: #{tpu_custom_call.1} parent=73 // loop_header_branch
                  %2287 = sbr.rel (%p2284) target = $region81
                $region78: #{tpu_custom_call.1} parent=73 // loop_body
                  %v2291 = vld [vmem:[%s2289] sm:$0xff]
                  %2292 = vst [vmem:[%s2290] sm:$0xff] %v2291
                  %v2293 = vld [vmem:[%s2289 + $0x8] sm:$0xff]
                  %2294 = vst [vmem:[%s2290 + $0x8] sm:$0xff] %v2293
                  %v2295 = vld [vmem:[%s2289 + $0x10] sm:$0xff]
                  %2296 = vst [vmem:[%s2290 + $0x10] sm:$0xff] %v2295
                  %v2297 = vld [vmem:[%s2289 + $0x18] sm:$0xff]
                  %2298 = vst [vmem:[%s2290 + $0x18] sm:$0xff] %v2297
                  %v2299 = vld [vmem:[%s2289 + $0x20] sm:$0xff]
                  %2300 = vst [vmem:[%s2290 + $0x20] sm:$0xff] %v2299
                  %v2301 = vld [vmem:[%s2289 + $0x28] sm:$0xff]
                  %2302 = vst [vmem:[%s2290 + $0x28] sm:$0xff] %v2301
                  %v2303 = vld [vmem:[%s2289 + $0x30] sm:$0xff]
                  %2304 = vst [vmem:[%s2290 + $0x30] sm:$0xff] %v2303
                  %v2305 = vld [vmem:[%s2289 + $0x38] sm:$0xff]
                  %2306 = vst [vmem:[%s2290 + $0x38] sm:$0xff] %v2305
                  %v2307 = vld [vmem:[%s2289 + $0x40] sm:$0xff]
                  %2308 = vst [vmem:[%s2290 + $0x40] sm:$0xff] %v2307
                  %v2309 = vld [vmem:[%s2289 + $0x48] sm:$0xff]
                  %2310 = vst [vmem:[%s2290 + $0x48] sm:$0xff] %v2309
                  %v2311 = vld [vmem:[%s2289 + $0x50] sm:$0xff]
                  %2312 = vst [vmem:[%s2290 + $0x50] sm:$0xff] %v2311
                  %v2313 = vld [vmem:[%s2289 + $0x58] sm:$0xff]
                  %2314 = vst [vmem:[%s2290 + $0x58] sm:$0xff] %v2313
                  %v2315 = vld [vmem:[%s2289 + $0x60] sm:$0xff]
                  %2316 = vst [vmem:[%s2290 + $0x60] sm:$0xff] %v2315
                  %v2317 = vld [vmem:[%s2289 + $0x68] sm:$0xff]
                  %2318 = vst [vmem:[%s2290 + $0x68] sm:$0xff] %v2317
                  %v2319 = vld [vmem:[%s2289 + $0x70] sm:$0xff]
                  %2320 = vst [vmem:[%s2290 + $0x70] sm:$0xff] %v2319
                  %v2321 = vld [vmem:[%s2289 + $0x78] sm:$0xff]
                  %2322 = vst [vmem:[%s2290 + $0x78] sm:$0xff] %v2321
                  %v2323 = vld [vmem:[%s2289 + $0x80] sm:$0xff]
                  %2324 = vst [vmem:[%s2290 + $0x80] sm:$0xff] %v2323
                  %v2325 = vld [vmem:[%s2289 + $0x88] sm:$0xff]
                  %2326 = vst [vmem:[%s2290 + $0x88] sm:$0xff] %v2325
                  %v2327 = vld [vmem:[%s2289 + $0x90] sm:$0xff]
                  %2328 = vst [vmem:[%s2290 + $0x90] sm:$0xff] %v2327
                  %v2329 = vld [vmem:[%s2289 + $0x98] sm:$0xff]
                  %2330 = vst [vmem:[%s2290 + $0x98] sm:$0xff] %v2329
                  %v2331 = vld [vmem:[%s2289 + $0xa0] sm:$0xff]
                  %2332 = vst [vmem:[%s2290 + $0xa0] sm:$0xff] %v2331
                  %v2333 = vld [vmem:[%s2289 + $0xa8] sm:$0xff]
                  %2334 = vst [vmem:[%s2290 + $0xa8] sm:$0xff] %v2333
                  %v2335 = vld [vmem:[%s2289 + $0xb0] sm:$0xff]
                  %2336 = vst [vmem:[%s2290 + $0xb0] sm:$0xff] %v2335
                  %v2337 = vld [vmem:[%s2289 + $0xb8] sm:$0xff]
                  %2338 = vst [vmem:[%s2290 + $0xb8] sm:$0xff] %v2337
                  %v2339 = vld [vmem:[%s2289 + $0xc0] sm:$0xff]
                  %2340 = vst [vmem:[%s2290 + $0xc0] sm:$0xff] %v2339
                  %v2341 = vld [vmem:[%s2289 + $0xc8] sm:$0xff]
                  %2342 = vst [vmem:[%s2290 + $0xc8] sm:$0xff] %v2341
                  %v2343 = vld [vmem:[%s2289 + $0xd0] sm:$0xff]
                  %2344 = vst [vmem:[%s2290 + $0xd0] sm:$0xff] %v2343
                  %v2345 = vld [vmem:[%s2289 + $0xd8] sm:$0xff]
                  %2346 = vst [vmem:[%s2290 + $0xd8] sm:$0xff] %v2345
                  %s2347 = sadd.s32 1, %s2288
                  %p2348 = scmp.ge.s32.totalorder %s2347, %s2280
                  %s2349 = scalar_select %p2348, 0, %s2347
                  %s2350 = smul.u32 %s2349, 224
                  %s2351 = smul.u32 %s2349, 224
                  %s2352 = scalar_lea.vmem %s2159, %s2350 [#allocation4]
                  %s2353 = scalar_lea.vmem %s2170, %s2351
                $region79: #{tpu_custom_call.1} parent=73 // loop_footer
                  %s2285 = sadd.s32 %s2283, 1
                $region80: #{tpu_custom_call.1} parent=73 // loop_footer_branch
                  %2282 = sbr.rel target = $region76
                $region81: #{tpu_custom_call.1} parent=73 // loop_exit
                  _
                %s2354 = sdiv.u32.pop %s2166, 28
                %s2355 = srem.u32.pop %s2166, 28
                %s2356 = smul.u32 %s2354, 28
                %s2357 = smul.u32 8, %s2356
                %s2358 = scalar_lea.vmem %s2159, %s2357 [#allocation4]
                %s2359 = smul.u32 8, %s2356
                %s2360 = scalar_lea.vmem %s2170, %s2359
                // While loop
                $region82: #{tpu_custom_call.1} parent=73 // loop_pre_header
                  _
                $region83: #{tpu_custom_call.1} parent=73 // loop_header
                  %s2362 = sphi 0, %s2364
                  %p2363 = scmp.ge.s32.totalorder %s2362, %s2355
                  %s2367 = sphi 0, %s2374
                  %s2368 = sphi %s2358, %s2377
                  %s2369 = sphi %s2360, %s2378
                $region84: #{tpu_custom_call.1} parent=73 // loop_header_branch
                  %2366 = sbr.rel (%p2363) target = $region88
                $region85: #{tpu_custom_call.1} parent=73 // loop_body
                  %v2370 = vld [vmem:[%s2368] sm:$0xff]
                  %2371 = vst [vmem:[%s2369] sm:$0xff] %v2370
                  %s2372 = sadd.s32 1, %s2367
                  %p2373 = scmp.ge.s32.totalorder %s2372, %s2355
                  %s2374 = scalar_select %p2373, 0, %s2372
                  %s2375 = smul.u32 %s2374, 8
                  %s2376 = smul.u32 %s2374, 8
                  %s2377 = scalar_lea.vmem %s2358, %s2375 [#allocation4]
                  %s2378 = scalar_lea.vmem %s2360, %s2376
                $region86: #{tpu_custom_call.1} parent=73 // loop_footer
                  %s2364 = sadd.s32 %s2362, 1
                $region87: #{tpu_custom_call.1} parent=73 // loop_footer_branch
                  %2361 = sbr.rel target = $region83
                $region88: #{tpu_custom_call.1} parent=73 // loop_exit
                  _
              $region74: #{tpu_custom_call.1} parent=51 // pred_fallthru
                _
              // Predicated region
              $region89: #{tpu_custom_call.1} parent=51 // pred_check
                _
              $region90: #{tpu_custom_call.1} parent=51 // pred_check_branch
                %2380 = sbr.rel target = $region92
              $region91: #{tpu_custom_call.1} parent=51 // pred_region
                _
              $region92: #{tpu_custom_call.1} parent=51 // pred_fallthru
                _
            $region52: #{tpu_custom_call.1} parent=47 // pred_fallthru
              _
            // Predicated region
            $region53: #{tpu_custom_call.1} parent=47 // pred_check
              _
            $region54: #{tpu_custom_call.1} parent=47 // pred_check_branch
              %2177 = sbr.rel target = $region56
            $region55: #{tpu_custom_call.1} parent=47 // pred_region
              %s2179 = sdiv.u32.pop %s2166, 28
              %s2180 = srem.u32.pop %s2166, 28
              // While loop
              $region57: #{tpu_custom_call.1} parent=55 // loop_pre_header
                _
              $region58: #{tpu_custom_call.1} parent=55 // loop_header
                %s2182 = sphi 0, %s2184
                %p2183 = scmp.ge.s32.totalorder %s2182, %s2179
                %s2187 = sphi 0, %s2248
                %s2188 = sphi %s2159, %s2251
                %s2189 = sphi %s2170, %s2252
              $region59: #{tpu_custom_call.1} parent=55 // loop_header_branch
                %2186 = sbr.rel (%p2183) target = $region63
              $region60: #{tpu_custom_call.1} parent=55 // loop_body
                %v2190 = vld [vmem:[%s2188] sm:$0xff]
                %2191 = vst [vmem:[%s2189] sm:$0xff] %v2190
                %v2192 = vld [vmem:[%s2188 + $0x8] sm:$0xff]
                %2193 = vst [vmem:[%s2189 + $0x8] sm:$0xff] %v2192
                %v2194 = vld [vmem:[%s2188 + $0x10] sm:$0xff]
                %2195 = vst [vmem:[%s2189 + $0x10] sm:$0xff] %v2194
                %v2196 = vld [vmem:[%s2188 + $0x18] sm:$0xff]
                %2197 = vst [vmem:[%s2189 + $0x18] sm:$0xff] %v2196
                %v2198 = vld [vmem:[%s2188 + $0x20] sm:$0xff]
                %2199 = vst [vmem:[%s2189 + $0x20] sm:$0xff] %v2198
                %v2200 = vld [vmem:[%s2188 + $0x28] sm:$0xff]
                %2201 = vst [vmem:[%s2189 + $0x28] sm:$0xff] %v2200
                %v2202 = vld [vmem:[%s2188 + $0x30] sm:$0xff]
                %2203 = vst [vmem:[%s2189 + $0x30] sm:$0xff] %v2202
                %v2204 = vld [vmem:[%s2188 + $0x38] sm:$0xff]
                %2205 = vst [vmem:[%s2189 + $0x38] sm:$0xff] %v2204
                %v2206 = vld [vmem:[%s2188 + $0x40] sm:$0xff]
                %2207 = vst [vmem:[%s2189 + $0x40] sm:$0xff] %v2206
                %v2208 = vld [vmem:[%s2188 + $0x48] sm:$0xff]
                %2209 = vst [vmem:[%s2189 + $0x48] sm:$0xff] %v2208
                %v2210 = vld [vmem:[%s2188 + $0x50] sm:$0xff]
                %2211 = vst [vmem:[%s2189 + $0x50] sm:$0xff] %v2210
                %v2212 = vld [vmem:[%s2188 + $0x58] sm:$0xff]
                %2213 = vst [vmem:[%s2189 + $0x58] sm:$0xff] %v2212
                %v2214 = vld [vmem:[%s2188 + $0x60] sm:$0xff]
                %2215 = vst [vmem:[%s2189 + $0x60] sm:$0xff] %v2214
                %v2216 = vld [vmem:[%s2188 + $0x68] sm:$0xff]
                %2217 = vst [vmem:[%s2189 + $0x68] sm:$0xff] %v2216
                %v2218 = vld [vmem:[%s2188 + $0x70] sm:$0xff]
                %2219 = vst [vmem:[%s2189 + $0x70] sm:$0xff] %v2218
                %v2220 = vld [vmem:[%s2188 + $0x78] sm:$0xff]
                %2221 = vst [vmem:[%s2189 + $0x78] sm:$0xff] %v2220
                %v2222 = vld [vmem:[%s2188 + $0x80] sm:$0xff]
                %2223 = vst [vmem:[%s2189 + $0x80] sm:$0xff] %v2222
                %v2224 = vld [vmem:[%s2188 + $0x88] sm:$0xff]
                %2225 = vst [vmem:[%s2189 + $0x88] sm:$0xff] %v2224
                %v2226 = vld [vmem:[%s2188 + $0x90] sm:$0xff]
                %2227 = vst [vmem:[%s2189 + $0x90] sm:$0xff] %v2226
                %v2228 = vld [vmem:[%s2188 + $0x98] sm:$0xff]
                %2229 = vst [vmem:[%s2189 + $0x98] sm:$0xff] %v2228
                %v2230 = vld [vmem:[%s2188 + $0xa0] sm:$0xff]
                %2231 = vst [vmem:[%s2189 + $0xa0] sm:$0xff] %v2230
                %v2232 = vld [vmem:[%s2188 + $0xa8] sm:$0xff]
                %2233 = vst [vmem:[%s2189 + $0xa8] sm:$0xff] %v2232
                %v2234 = vld [vmem:[%s2188 + $0xb0] sm:$0xff]
                %2235 = vst [vmem:[%s2189 + $0xb0] sm:$0xff] %v2234
                %v2236 = vld [vmem:[%s2188 + $0xb8] sm:$0xff]
                %2237 = vst [vmem:[%s2189 + $0xb8] sm:$0xff] %v2236
                %v2238 = vld [vmem:[%s2188 + $0xc0] sm:$0xff]
                %2239 = vst [vmem:[%s2189 + $0xc0] sm:$0xff] %v2238
                %v2240 = vld [vmem:[%s2188 + $0xc8] sm:$0xff]
                %2241 = vst [vmem:[%s2189 + $0xc8] sm:$0xff] %v2240
                %v2242 = vld [vmem:[%s2188 + $0xd0] sm:$0xff]
                %2243 = vst [vmem:[%s2189 + $0xd0] sm:$0xff] %v2242
                %v2244 = vld [vmem:[%s2188 + $0xd8] sm:$0xff]
                %2245 = vst [vmem:[%s2189 + $0xd8] sm:$0xff] %v2244
                %s2246 = sadd.s32 1, %s2187
                %p2247 = scmp.ge.s32.totalorder %s2246, %s2179
                %s2248 = scalar_select %p2247, 0, %s2246
                %s2249 = smul.u32 %s2248, 224
                %s2250 = smul.u32 %s2248, 224
                %s2251 = scalar_lea.vmem %s2159, %s2249 [#allocation4]
                %s2252 = scalar_lea.vmem %s2170, %s2250
              $region61: #{tpu_custom_call.1} parent=55 // loop_footer
                %s2184 = sadd.s32 %s2182, 1
              $region62: #{tpu_custom_call.1} parent=55 // loop_footer_branch
                %2181 = sbr.rel target = $region58
              $region63: #{tpu_custom_call.1} parent=55 // loop_exit
                _
              %s2253 = sdiv.u32.pop %s2166, 28
              %s2254 = srem.u32.pop %s2166, 28
              %s2255 = smul.u32 %s2253, 28
              %s2256 = smul.u32 8, %s2255
              %s2257 = scalar_lea.vmem %s2159, %s2256 [#allocation4]
              %s2258 = smul.u32 8, %s2255
              %s2259 = scalar_lea.vmem %s2170, %s2258
              // While loop
              $region64: #{tpu_custom_call.1} parent=55 // loop_pre_header
                _
              $region65: #{tpu_custom_call.1} parent=55 // loop_header
                %s2261 = sphi 0, %s2263
                %p2262 = scmp.ge.s32.totalorder %s2261, %s2254
                %s2266 = sphi 0, %s2273
                %s2267 = sphi %s2257, %s2276
                %s2268 = sphi %s2259, %s2277
              $region66: #{tpu_custom_call.1} parent=55 // loop_header_branch
                %2265 = sbr.rel (%p2262) target = $region70
              $region67: #{tpu_custom_call.1} parent=55 // loop_body
                %v2269 = vld [vmem:[%s2267] sm:$0xff]
                %2270 = vst [vmem:[%s2268] sm:$0xff] %v2269
                %s2271 = sadd.s32 1, %s2266
                %p2272 = scmp.ge.s32.totalorder %s2271, %s2254
                %s2273 = scalar_select %p2272, 0, %s2271
                %s2274 = smul.u32 %s2273, 8
                %s2275 = smul.u32 %s2273, 8
                %s2276 = scalar_lea.vmem %s2257, %s2274 [#allocation4]
                %s2277 = scalar_lea.vmem %s2259, %s2275
              $region68: #{tpu_custom_call.1} parent=55 // loop_footer
                %s2263 = sadd.s32 %s2261, 1
              $region69: #{tpu_custom_call.1} parent=55 // loop_footer_branch
                %2260 = sbr.rel target = $region65
              $region70: #{tpu_custom_call.1} parent=55 // loop_exit
                _
            $region56: #{tpu_custom_call.1} parent=47 // pred_fallthru
              _
          $region48: #{tpu_custom_call.1} parent=43 // pred_fallthru
            _
          %2381 = vnop
        $region44: #{tpu_custom_call.1} parent=35 // pred_fallthru
          _
      $region36: #{tpu_custom_call.1} parent=5 // pred_fallthru
        _
      %p2382 = scmp.le.s32.totalorder 2, %s13
      // Predicated region
      $region93: #{tpu_custom_call.1} parent=5 // pred_check
        %p2383 = pneg %p2382
      $region94: #{tpu_custom_call.1} parent=5 // pred_check_branch
        %2385 = sbr.rel (%p2383) target = $region96
      $region95: #{tpu_custom_call.1} parent=5 // pred_region
        %s2386 = ssub.s32 %s13, 2
        // Predicated region
        $region97: #{tpu_custom_call.1} parent=95 // pred_check
          %p2387 = pneg %p131
        $region98: #{tpu_custom_call.1} parent=95 // pred_check_branch
          %2389 = sbr.rel (%p2387) target = $region100
        $region99: #{tpu_custom_call.1} parent=95 // pred_region
          %s2390 = sand.u32 %s116, 1
          %s2391 = sand.u32 %s116, 1
          %s2392 = smul.addr %s2391, 224
          %s2393 = scalar_lea.vmem [#allocation4], %s2392
        $region100: #{tpu_custom_call.1} parent=95 // pred_fallthru
          _
      $region96: #{tpu_custom_call.1} parent=5 // pred_fallthru
        _
    $region6: #{tpu_custom_call.1} parent=1 // loop_footer
      %s17 = sadd.s32 1, %s13
    $region7: #{tpu_custom_call.1} parent=1 // loop_footer_branch
      %12 = sbr.rel target = $region3
    $region8: #{tpu_custom_call.1} parent=1 // loop_exit
      _
    %2394 = vsyncpa [#allocation3], 1
    %s2395 = scalar_lea.sflag [#allocation3], 1
    %2396 = vsyncpa %s2395, 1

</llo_original>
